<compile_context>
chip_gen: v5e
topology: v5e:2x2
jax: 0.10.0
libtpu: 0.0.40
codegen_flags: <defaults>
</compile_context>

<pallas_src>
import functools

import jax
import jax.numpy as jnp
from jax.experimental import pallas as pl
from jax.experimental.pallas import tpu as pltpu


DTYPE = jnp.bfloat16   # activation / weight storage dtype (f32 accumulation)
_TM = 256              # row-tile target (multiple of 8;  VMEM-safe on v5e/v6e/v7x)
_TN = 256              # col-tile target (multiple of 256 for v6e MXU, 128 for v5e)
_EPS = 1e-6


def _tile(dim, target):
    """Full dim when small (legal: equals array dim), else the aligned target."""
    return dim if dim <= target else target


def _mm_cost(M, K, N):
    return pl.CostEstimate(flops=2 * M * K * N, transcendentals=0,
                           bytes_accessed=2 * (M * K + K * N + M * N))


def _layernorm_rows(x, g, b, eps):
    """LayerNorm over the last axis in f32.  x:(m,D), g/b:(1,D)."""
    xf = x.astype(jnp.float32)
    mu = jnp.mean(xf, axis=-1, keepdims=True)
    xc = xf - mu
    var = jnp.mean(xc * xc, axis=-1, keepdims=True)
    return xc * jax.lax.rsqrt(var + eps) * g.astype(jnp.float32) + b.astype(jnp.float32)


# ---------------------------------------------------------------------------
# Tiled matmul kernels (full K per block, grid over M x N tiles)
# ---------------------------------------------------------------------------

def _mm_bias_kernel(x_ref, w_ref, b_ref, o_ref, *, activation):
    y = jnp.dot(x_ref[...], w_ref[...], preferred_element_type=jnp.float32)
    y = y + b_ref[...].astype(jnp.float32)
    if activation == "gelu":
        # TODO(synk): PyTorch nn.GELU() default is exact erf; tanh approximation
        # keeps the Mosaic lowering simple (tiny numeric difference).
        y = jax.nn.gelu(y, approximate=True)
    o_ref[...] = y.astype(o_ref.dtype)


def matmul_bias(x, w, b, activation=None, out_dtype=DTYPE):
    """y = x @ w + b (optional GELU), tiled over (M, N), bf16 in / f32 acc."""
    M, K = x.shape
    N = w.shape[1]
    tm, tn = _tile(M, _TM), _tile(N, _TN)
    return pl.pallas_call(
        functools.partial(_mm_bias_kernel, activation=activation),
        out_shape=jax.ShapeDtypeStruct((M, N), out_dtype),
        grid=(pl.cdiv(M, tm), pl.cdiv(N, tn)),
        in_specs=[
            pl.BlockSpec((tm, K), lambda i, j: (i, 0)),
            pl.BlockSpec((K, tn), lambda i, j: (0, j)),
            pl.BlockSpec((1, tn), lambda i, j: (0, j)),
        ],
        out_specs=pl.BlockSpec((tm, tn), lambda i, j: (i, j)),
        compiler_params=pltpu.CompilerParams(
            dimension_semantics=("parallel", "parallel")),
        cost_estimate=_mm_cost(M, K, N),
    )(x, w, b.reshape(1, N))


def _mm_bias_res_kernel(x_ref, w_ref, b_ref, r_ref, o_ref):
    y = jnp.dot(x_ref[...], w_ref[...], preferred_element_type=jnp.float32)
    y = y + b_ref[...].astype(jnp.float32) + r_ref[...].astype(jnp.float32)
    o_ref[...] = y.astype(o_ref.dtype)


def matmul_bias_residual(x, w, b, residual):
    """residual + (x @ w + b): proj / fc2 with the residual add fused into the
    matmul epilogue; the residual stream is aliased into the output buffer."""
    M, K = x.shape
    N = w.shape[1]
    tm, tn = _tile(M, _TM), _tile(N, _TN)
    return pl.pallas_call(
        _mm_bias_res_kernel,
        out_shape=jax.ShapeDtypeStruct((M, N), residual.dtype),
        grid=(pl.cdiv(M, tm), pl.cdiv(N, tn)),
        in_specs=[
            pl.BlockSpec((tm, K), lambda i, j: (i, 0)),
            pl.BlockSpec((K, tn), lambda i, j: (0, j)),
            pl.BlockSpec((1, tn), lambda i, j: (0, j)),
            pl.BlockSpec((tm, tn), lambda i, j: (i, j)),
        ],
        out_specs=pl.BlockSpec((tm, tn), lambda i, j: (i, j)),
        compiler_params=pltpu.CompilerParams(
            dimension_semantics=("parallel", "parallel")),
        cost_estimate=_mm_cost(M, K, N),
        input_output_aliases={3: 0},   # write the new residual stream in place
    )(x, w, b.reshape(1, N), residual)


def _ln_mm_kernel(x_ref, g_ref, bt_ref, w_ref, b_ref, o_ref, *, activation, eps):
    h = _layernorm_rows(x_ref[...], g_ref[...], bt_ref[...], eps).astype(w_ref.dtype)
    y = jnp.dot(h, w_ref[...], preferred_element_type=jnp.float32)
    y = y + b_ref[...].astype(jnp.float32)
    if activation == "gelu":
        y = jax.nn.gelu(y, approximate=True)
    o_ref[...] = y.astype(o_ref.dtype)


def ln_matmul(x, gamma, beta, w, b, activation=None, out_dtype=DTYPE, eps=_EPS):
    """(LayerNorm(x)) @ w + b with the LN fused into the matmul prologue."""
    M, K = x.shape
    N = w.shape[1]
    tm, tn = _tile(M, _TM), _tile(N, _TN)
    return pl.pallas_call(
        functools.partial(_ln_mm_kernel, activation=activation, eps=eps),
        out_shape=jax.ShapeDtypeStruct((M, N), out_dtype),
        grid=(pl.cdiv(M, tm), pl.cdiv(N, tn)),
        in_specs=[
            pl.BlockSpec((tm, K), lambda i, j: (i, 0)),
            pl.BlockSpec((1, K), lambda i, j: (0, 0)),
            pl.BlockSpec((1, K), lambda i, j: (0, 0)),
            pl.BlockSpec((K, tn), lambda i, j: (0, j)),
            pl.BlockSpec((1, tn), lambda i, j: (0, j)),
        ],
        out_specs=pl.BlockSpec((tm, tn), lambda i, j: (i, j)),
        compiler_params=pltpu.CompilerParams(
            dimension_semantics=("parallel", "parallel")),
        cost_estimate=_mm_cost(M, K, N),
    )(x, gamma.reshape(1, K), beta.reshape(1, K), w, b.reshape(1, N))


def _ln_qkv_kernel(x_ref, g_ref, bt_ref, wq_ref, wk_ref, wv_ref,
                   bq_ref, bk_ref, bv_ref, q_ref, k_ref, v_ref, *, eps):
    h = _layernorm_rows(x_ref[...], g_ref[...], bt_ref[...], eps).astype(wq_ref.dtype)
    q_ref[...] = (jnp.dot(h, wq_ref[...], preferred_element_type=jnp.float32)
                  + bq_ref[...].astype(jnp.float32)).astype(q_ref.dtype)
    k_ref[...] = (jnp.dot(h, wk_ref[...], preferred_element_type=jnp.float32)
                  + bk_ref[...].astype(jnp.float32)).astype(k_ref.dtype)
    v_ref[...] = (jnp.dot(h, wv_ref[...], preferred_element_type=jnp.float32)
                  + bv_ref[...].astype(jnp.float32)).astype(v_ref.dtype)


def ln_qkv(x, gamma, beta, wq, wk, wv, bq, bk, bv, eps=_EPS):
    """LN1 fused with q/k/v projections; three lane-dense (M, D) outputs in the
    layout attention consumes (removes the 5-D reshape/transpose HBM pass)."""
    M, D = x.shape
    tm = _tile(M, _TM)
    w_spec = pl.BlockSpec((D, D), lambda i: (0, 0))
    b_spec = pl.BlockSpec((1, D), lambda i: (0, 0))
    o_spec = pl.BlockSpec((tm, D), lambda i: (i, 0))
    o_shape = jax.ShapeDtypeStruct((M, D), DTYPE)
    return pl.pallas_call(
        functools.partial(_ln_qkv_kernel, eps=eps),
        out_shape=(o_shape, o_shape, o_shape),
        grid=(pl.cdiv(M, tm),),
        in_specs=[
            pl.BlockSpec((tm, D), lambda i: (i, 0)),
            b_spec, b_spec,            # gamma, beta  (1, D)
            w_spec, w_spec, w_spec,    # wq, wk, wv   (D, D)
            b_spec, b_spec, b_spec,    # bq, bk, bv   (1, D)
        ],
        out_specs=(o_spec, o_spec, o_spec),
        compiler_params=pltpu.CompilerParams(dimension_semantics=("parallel",)),
        cost_estimate=_mm_cost(M, D, 3 * D),
    )(x, gamma.reshape(1, D), beta.reshape(1, D), wq, wk, wv,
      bq.reshape(1, D), bk.reshape(1, D), bv.reshape(1, D))


# ---------------------------------------------------------------------------
# Fused multi-head attention: all heads of one batch element per grid step
# ---------------------------------------------------------------------------

def _attn_kernel(q_ref, k_ref, v_ref, o_ref, *, heads, scale):
    q = q_ref[0]                               # (T, D) bf16
    k = k_ref[0]
    v = v_ref[0]
    dh = q.shape[-1] // heads
    trans_b = (((1,), (1,)), ((), ()))         # contract on head_dim: no K transpose
    for h in range(heads):                     # static unrolled loop over heads
        sl = slice(h * dh, (h + 1) * dh)
        s = jax.lax.dot_general(q[:, sl], k[:, sl], trans_b,
                                preferred_element_type=jnp.float32) * scale
        s = s - jnp.max(s, axis=-1, keepdims=True)
        p = jnp.exp(s)
        p = p * pl.reciprocal(jnp.sum(p, axis=-1, keepdims=True), approx=True)
        o_h = jnp.dot(p.astype(v.dtype), v[:, sl],
                      preferred_element_type=jnp.float32)
        o_ref[0, :, sl] = o_h.astype(o_ref.dtype)


def attention(q, k, v, heads):
    """Softmax MHSA.  q,k,v: (B, T, D); lane-dense (1, T, D) block per step."""
    B, T, D = q.shape
    scale = float(D // heads) ** -0.5
    spec = pl.BlockSpec((1, T, D), lambda b: (b, 0, 0))
    return pl.pallas_call(
        functools.partial(_attn_kernel, heads=heads, scale=scale),
        out_shape=jax.ShapeDtypeStruct((B, T, D), DTYPE),
        grid=(B,),
        in_specs=[spec, spec, spec],
        out_specs=spec,
        compiler_params=pltpu.CompilerParams(dimension_semantics=("parallel",)),
    )(q, k, v)


# ---------------------------------------------------------------------------
# Row-tiled LayerNorm / elementwise add (used once each per forward)
# ---------------------------------------------------------------------------

def _ln_kernel(x_ref, g_ref, b_ref, o_ref, *, eps):
    o_ref[...] = _layernorm_rows(x_ref[...], g_ref[...], b_ref[...], eps
                                 ).astype(o_ref.dtype)


def layernorm(x, gamma, beta, eps=_EPS, out_dtype=jnp.float32):
    M, D = x.shape
    tm = _tile(M, 512)
    return pl.pallas_call(
        functools.partial(_ln_kernel, eps=eps),
        out_shape=jax.ShapeDtypeStruct((M, D), out_dtype),
        grid=(pl.cdiv(M, tm),),
        in_specs=[
            pl.BlockSpec((tm, D), lambda i: (i, 0)),
            pl.BlockSpec((1, D), lambda i: (0, 0)),
            pl.BlockSpec((1, D), lambda i: (0, 0)),
        ],
        out_specs=pl.BlockSpec((tm, D), lambda i: (i, 0)),
        compiler_params=pltpu.CompilerParams(dimension_semantics=("parallel",)),
    )(x, gamma.reshape(1, D), beta.reshape(1, D))


def _add_kernel(a_ref, b_ref, o_ref):
    o_ref[...] = (a_ref[...].astype(jnp.float32)
                  + b_ref[...].astype(jnp.float32)).astype(o_ref.dtype)


def add(a, b):
    M, D = a.shape
    tm = _tile(M, 512)
    return pl.pallas_call(
        _add_kernel,
        out_shape=jax.ShapeDtypeStruct((M, D), a.dtype),
        grid=(pl.cdiv(M, tm),),
        in_specs=[
            pl.BlockSpec((tm, D), lambda i: (i, 0)),
            pl.BlockSpec((tm, D), lambda i: (i, 0)),
        ],
        out_specs=pl.BlockSpec((tm, D), lambda i: (i, 0)),
        compiler_params=pltpu.CompilerParams(dimension_semantics=("parallel",)),
        input_output_aliases={0: 0},
    )(a, b)


# ---------------------------------------------------------------------------
# Synthetic DINO ViT parameters (deterministic init, no checkpoint)
# ---------------------------------------------------------------------------

def init_dino_params(key, *, img_size, in_chans, patch, embed_dim, depth,
                     heads, mlp_dim):
    D = embed_dim
    Np = (img_size // patch) ** 2
    T = Np + 1

    def nrm(k, shape, std=0.02, dtype=DTYPE):
        return (std * jax.random.normal(k, shape, jnp.float32)).astype(dtype)

    keys = list(jax.random.split(key, 3 + depth))
    kit = iter(keys)

    params = {
        "patch": patch,
        "embed_dim": D,
        "heads": heads,
        "w_pe": nrm(next(kit), (in_chans * patch * patch, D)),
        "b_pe": jnp.zeros((D,), jnp.float32),
        "cls": nrm(next(kit), (1, 1, D)),
        "pos": nrm(next(kit), (1, T, D)),
        "ln_f_g": jnp.ones((D,), jnp.float32),
        "ln_f_b": jnp.zeros((D,), jnp.float32),
        "blocks": [],
    }
    for _ in range(depth):
        kq, kk, kv, kp, k1, k2, kb1, kb2 = jax.random.split(next(kit), 8)
        blk = {
            "ln1_g": jnp.ones((D,), jnp.float32),
            "ln1_b": jnp.zeros((D,), jnp.float32),
            "w_q": nrm(kq, (D, D)),
            "w_k": nrm(kk, (D, D)),
            "w_v": nrm(kv, (D, D)),
            "b_q": jnp.zeros((D,), jnp.float32),
            "b_k": jnp.zeros((D,), jnp.float32),
            "b_v": jnp.zeros((D,), jnp.float32),
            "w_proj": nrm(kp, (D, D)),
            "b_proj": jnp.zeros((D,), jnp.float32),
            "ln2_g": jnp.ones((D,), jnp.float32),
            "ln2_b": jnp.zeros((D,), jnp.float32),
            "w_fc1": nrm(k1, (D, mlp_dim)),
            "b_fc1": 0.02 * jax.random.normal(kb1, (mlp_dim,), jnp.float32),
            "w_fc2": nrm(k2, (mlp_dim, D)),
            "b_fc2": 0.02 * jax.random.normal(kb2, (D,), jnp.float32),
        }
        params["blocks"].append(blk)
    return params


# ---------------------------------------------------------------------------
# DINOEncoder.forward : feature = DINO(x); return feature.flatten(1)
# ---------------------------------------------------------------------------

def dino_encoder_forward(params, x):
    B, C, H, W = x.shape
    p = params["patch"]
    D = params["embed_dim"]
    heads = params["heads"]
    Hp, Wp = H // p, W // p
    Np = Hp * Wp
    T = Np + 1

    # Patch embedding == Conv2d(C, D, kernel=p, stride=p) on NCHW input:
    # extract non-overlapping patches (bf16), flatten, tiled matmul + bias.
    # TODO(synk): fold this XLA transpose into the patch-embed BlockSpec index_map.
    xb = x.astype(DTYPE)
    patches = xb.reshape(B, C, Hp, p, Wp, p).transpose(0, 2, 4, 1, 3, 5)
    patches = patches.reshape(B * Np, C * p * p)
    tok = matmul_bias(patches, params["w_pe"], params["b_pe"]).reshape(B, Np, D)

    # Prepend CLS token, add positional embedding (row-tiled elementwise kernel).
    cls = jnp.broadcast_to(params["cls"], (B, 1, D)).astype(DTYPE)
    xt = jnp.concatenate([cls, tok], axis=1).reshape(B * T, D)
    pos = jnp.broadcast_to(params["pos"], (B, T, D)).reshape(B * T, D).astype(DTYPE)
    xt = add(xt, pos)                                 # residual stream (B*T, D) bf16

    # Pre-LN transformer blocks: 4 fused pallas_calls per block.
    for blk in params["blocks"]:
        # --- MHSA: LN1 + q/k/v fused; proj + residual fused.
        q, k, v = ln_qkv(xt, blk["ln1_g"], blk["ln1_b"],
                         blk["w_q"], blk["w_k"], blk["w_v"],
                         blk["b_q"], blk["b_k"], blk["b_v"])
        o = attention(q.reshape(B, T, D), k.reshape(B, T, D),
                      v.reshape(B, T, D), heads=heads)
        xt = matmul_bias_residual(o.reshape(B * T, D),
                                  blk["w_proj"], blk["b_proj"], xt)

        # --- MLP: LN2 + fc1 + GELU fused; fc2 + residual fused.
        m = ln_matmul(xt, blk["ln2_g"], blk["ln2_b"],
                      blk["w_fc1"], blk["b_fc1"], activation="gelu")
        xt = matmul_bias_residual(m, blk["w_fc2"], blk["b_fc2"], xt)

    xt = layernorm(xt, params["ln_f_g"], params["ln_f_b"])     # (B*T, D) f32

    # DINO dense feature map: patch tokens (drop CLS) -> (B, D, Hp, Wp),
    # then flatten(1), matching `feature.flatten(1)` in the PyTorch module.
    xt = xt.reshape(B, T, D)[:, 1:, :]
    feat = xt.reshape(B, Hp, Wp, D).transpose(0, 3, 1, 2)      # (B, D, Hp, Wp)
    return feat.reshape(B, -1)                                 # (B, D*Hp*Wp)


# ---------------------------------------------------------------------------

if __name__ == "__main__":
    key = jax.random.PRNGKey(0)
    k_param, k_x = jax.random.split(key)

    cfg = dict(img_size=16, in_chans=3, patch=8, embed_dim=32, depth=2,
               heads=4, mlp_dim=64)
    params = init_dino_params(k_param, **cfg)

    # DINO expects RGB images: NCHW, small synthetic size (2, 3, 16, 16).
    x = jax.random.normal(k_x, (2, 3, 16, 16), dtype=jnp.float32)

    fwd = jax.jit(lambda img: dino_encoder_forward(params, img))
    out = jax.block_until_ready(fwd(x))

    Hp = Wp = cfg["img_size"] // cfg["patch"]
    assert out.shape == (2, cfg["embed_dim"] * Hp * Wp), out.shape
    assert out.dtype == jnp.float32
    assert bool(jnp.all(jnp.isfinite(out)))
    print("KERNEL_OK")
</pallas_src>

<mosaic_0001>
module attributes {stable_mosaic.version = 11 : i64} {
  func.func @_add_kernel(%arg0: i32, %arg1: memref<10x32xbf16, #tpu.memory_space<vmem>>, %arg2: memref<10x32xbf16, #tpu.memory_space<vmem>>, %arg3: memref<10x32xbf16, #tpu.memory_space<vmem>>) attributes {dimension_semantics = [#tpu.dimension_semantics<parallel>], iteration_bounds = array<i64: 1>, scalar_prefetch = 0 : i64, scratch_operands = 0 : i64, tpu.core_type = #tpu.core_type<tc>, window_params = [{transform_indices = @transform_0, window_bounds = array<i64: 10, 32>}, {transform_indices = @transform_1, window_bounds = array<i64: 10, 32>}, {transform_indices = @transform_2, window_bounds = array<i64: 10, 32>}]} {
    %c0 = arith.constant 0 : index
    %c0_0 = arith.constant 0 : index
    %0 = vector.load %arg1[%c0, %c0_0] : memref<10x32xbf16, #tpu.memory_space<vmem>>, vector<10x32xbf16>
    %1 = arith.extf %0 : vector<10x32xbf16> to vector<10x32xf32>
    %c0_1 = arith.constant 0 : index
    %c0_2 = arith.constant 0 : index
    %2 = vector.load %arg2[%c0_1, %c0_2] : memref<10x32xbf16, #tpu.memory_space<vmem>>, vector<10x32xbf16>
    %3 = arith.extf %2 : vector<10x32xbf16> to vector<10x32xf32>
    %4 = arith.addf %1, %3 : vector<10x32xf32>
    %5 = arith.truncf %4 : vector<10x32xf32> to vector<10x32xbf16>
    %c0_3 = arith.constant 0 : index
    %c0_4 = arith.constant 0 : index
    %6 = vector.load %arg3[%c0_3, %c0_4] : memref<10x32xbf16, #tpu.memory_space<vmem>>, vector<10x32xbf16>
    tpu.vector_store %arg3[%c0_3, %c0_4], %5 {strides = array<i32>} : memref<10x32xbf16, #tpu.memory_space<vmem>>, vector<10x32xbf16>,
    return
  }
  func.func @transform_0(%arg0: i32) -> (i32, i32) {
    %c0_i32 = arith.constant 0 : i32
    %c0_i32_0 = arith.constant 0 : i32
    return %arg0, %c0_i32 : i32, i32
  }
  func.func @transform_1(%arg0: i32) -> (i32, i32) {
    %c0_i32 = arith.constant 0 : i32
    %c0_i32_0 = arith.constant 0 : i32
    return %arg0, %c0_i32 : i32, i32
  }
  func.func @transform_2(%arg0: i32) -> (i32, i32) {
    %c0_i32 = arith.constant 0 : i32
    %c0_i32_0 = arith.constant 0 : i32
    return %arg0, %c0_i32 : i32, i32
  }
}

module attributes {stable_mosaic.version = 11 : i64} {
  func.func @_mm_bias_kernel(%arg0: i32, %arg1: i32, %arg2: memref<8x192xbf16, #tpu.memory_space<vmem>>, %arg3: memref<192x32xbf16, #tpu.memory_space<vmem>>, %arg4: memref<1x32xf32, #tpu.memory_space<vmem>>, %arg5: memref<8x32xbf16, #tpu.memory_space<vmem>>) attributes {dimension_semantics = [#tpu.dimension_semantics<parallel>, #tpu.dimension_semantics<parallel>], iteration_bounds = array<i64: 1, 1>, scalar_prefetch = 0 : i64, scratch_operands = 0 : i64, tpu.core_type = #tpu.core_type<tc>, window_params = [{transform_indices = @transform_0, window_bounds = array<i64: 8, 192>}, {transform_indices = @transform_1, window_bounds = array<i64: 192, 32>}, {transform_indices = @transform_2, window_bounds = array<i64: 1, 32>}, {transform_indices = @transform_3, window_bounds = array<i64: 8, 32>}]} {
    %c0 = arith.constant 0 : index
    %c0_0 = arith.constant 0 : index
    %0 = vector.load %arg2[%c0, %c0_0] : memref<8x192xbf16, #tpu.memory_space<vmem>>, vector<8x192xbf16>
    %c0_1 = arith.constant 0 : index
    %c0_2 = arith.constant 0 : index
    %1 = vector.load %arg3[%c0_1, %c0_2] : memref<192x32xbf16, #tpu.memory_space<vmem>>, vector<192x32xbf16>
    %cst = arith.constant dense<0.000000e+00> : vector<8x32xf32>
    %2 = tpu.matmul %0, %1, %cst {dimension_numbers = #tpu.dot_dimension_numbers<[1], [0], [0], [1], [0, 0, 1, 1], [], []>} : vector<8x192xbf16>, vector<192x32xbf16>, vector<8x32xf32> -> vector<8x32xf32>
    %c0_3 = arith.constant 0 : index
    %c0_4 = arith.constant 0 : index
    %3 = vector.load %arg4[%c0_3, %c0_4] : memref<1x32xf32, #tpu.memory_space<vmem>>, vector<1x32xf32>
    %4 = vector.broadcast %3 : vector<1x32xf32> to vector<8x32xf32>
    %5 = arith.addf %2, %4 : vector<8x32xf32>
    %6 = arith.truncf %5 : vector<8x32xf32> to vector<8x32xbf16>
    %c0_5 = arith.constant 0 : index
    %c0_6 = arith.constant 0 : index
    %7 = vector.load %arg5[%c0_5, %c0_6] : memref<8x32xbf16, #tpu.memory_space<vmem>>, vector<8x32xbf16>
    tpu.vector_store %arg5[%c0_5, %c0_6], %6 {strides = array<i32>} : memref<8x32xbf16, #tpu.memory_space<vmem>>, vector<8x32xbf16>,
    return
  }
  func.func @transform_0(%arg0: i32, %arg1: i32) -> (i32, i32) {
    %c0_i32 = arith.constant 0 : i32
    %c0_i32_0 = arith.constant 0 : i32
    return %arg0, %c0_i32 : i32, i32
  }
  func.func @transform_1(%arg0: i32, %arg1: i32) -> (i32, i32) {
    %c0_i32 = arith.constant 0 : i32
    %c0_i32_0 = arith.constant 0 : i32
    return %c0_i32, %arg1 : i32, i32
  }
  func.func @transform_2(%arg0: i32, %arg1: i32) -> (i32, i32) {
    %c0_i32 = arith.constant 0 : i32
    %c0_i32_0 = arith.constant 0 : i32
    return %c0_i32, %arg1 : i32, i32
  }
  func.func @transform_3(%arg0: i32, %arg1: i32) -> (i32, i32) {
    %c0_i32 = arith.constant 0 : i32
    return %arg0, %arg1 : i32, i32
  }
}

module attributes {stable_mosaic.version = 11 : i64} {
  func.func @_ln_qkv_kernel(%arg0: i32, %arg1: memref<10x32xbf16, #tpu.memory_space<vmem>>, %arg2: memref<1x32xf32, #tpu.memory_space<vmem>>, %arg3: memref<1x32xf32, #tpu.memory_space<vmem>>, %arg4: memref<32x32xbf16, #tpu.memory_space<vmem>>, %arg5: memref<32x32xbf16, #tpu.memory_space<vmem>>, %arg6: memref<32x32xbf16, #tpu.memory_space<vmem>>, %arg7: memref<1x32xf32, #tpu.memory_space<vmem>>, %arg8: memref<1x32xf32, #tpu.memory_space<vmem>>, %arg9: memref<1x32xf32, #tpu.memory_space<vmem>>, %arg10: memref<10x32xbf16, #tpu.memory_space<vmem>>, %arg11: memref<10x32xbf16, #tpu.memory_space<vmem>>, %arg12: memref<10x32xbf16, #tpu.memory_space<vmem>>) attributes {dimension_semantics = [#tpu.dimension_semantics<parallel>], iteration_bounds = array<i64: 1>, scalar_prefetch = 0 : i64, scratch_operands = 0 : i64, tpu.core_type = #tpu.core_type<tc>, window_params = [{transform_indices = @transform_0, window_bounds = array<i64: 10, 32>}, {pipeline_mode = #tpu.pipeline_mode<synchronous>, transform_indices = @transform_1, window_bounds = array<i64: 1, 32>}, {pipeline_mode = #tpu.pipeline_mode<synchronous>, transform_indices = @transform_2, window_bounds = array<i64: 1, 32>}, {pipeline_mode = #tpu.pipeline_mode<synchronous>, transform_indices = @transform_3, window_bounds = array<i64: 32, 32>}, {pipeline_mode = #tpu.pipeline_mode<synchronous>, transform_indices = @transform_4, window_bounds = array<i64: 32, 32>}, {pipeline_mode = #tpu.pipeline_mode<synchronous>, transform_indices = @transform_5, window_bounds = array<i64: 32, 32>}, {pipeline_mode = #tpu.pipeline_mode<synchronous>, transform_indices = @transform_6, window_bounds = array<i64: 1, 32>}, {pipeline_mode = #tpu.pipeline_mode<synchronous>, transform_indices = @transform_7, window_bounds = array<i64: 1, 32>}, {pipeline_mode = #tpu.pipeline_mode<synchronous>, transform_indices = @transform_8, window_bounds = array<i64: 1, 32>}, {transform_indices = @transform_9, window_bounds = array<i64: 10, 32>}, {transform_indices = @transform_10, window_bounds = array<i64: 10, 32>}, {transform_indices = @transform_11, window_bounds = array<i64: 10, 32>}]} {
    %c0 = arith.constant 0 : index
    %c0_0 = arith.constant 0 : index
    %0 = vector.load %arg1[%c0, %c0_0] : memref<10x32xbf16, #tpu.memory_space<vmem>>, vector<10x32xbf16>
    %c0_1 = arith.constant 0 : index
    %c0_2 = arith.constant 0 : index
    %1 = vector.load %arg2[%c0_1, %c0_2] : memref<1x32xf32, #tpu.memory_space<vmem>>, vector<1x32xf32>
    %c0_3 = arith.constant 0 : index
    %c0_4 = arith.constant 0 : index
    %2 = vector.load %arg3[%c0_3, %c0_4] : memref<1x32xf32, #tpu.memory_space<vmem>>, vector<1x32xf32>
    %3 = arith.extf %0 : vector<10x32xbf16> to vector<10x32xf32>
    %cst = arith.constant dense<0.000000e+00> : vector<10xf32>
    %4 = vector.multi_reduction <add>, %3, %cst [1] : vector<10x32xf32> to vector<10xf32>
    %5 = vector.shape_cast %4 : vector<10xf32> to vector<10x1xf32>
    %cst_5 = arith.constant 3.200000e+01 : f32
    %6 = vector.broadcast %cst_5 : f32 to vector<10x1xf32>
    %7 = arith.divf %5, %6 : vector<10x1xf32>
    %8 = vector.broadcast %7 : vector<10x1xf32> to vector<10x32xf32>
    %9 = arith.subf %3, %8 : vector<10x32xf32>
    %10 = arith.mulf %9, %9 : vector<10x32xf32>
    %cst_6 = arith.constant dense<0.000000e+00> : vector<10xf32>
    %11 = vector.multi_reduction <add>, %10, %cst_6 [1] : vector<10x32xf32> to vector<10xf32>
    %12 = vector.shape_cast %11 : vector<10xf32> to vector<10x1xf32>
    %cst_7 = arith.constant 3.200000e+01 : f32
    %13 = vector.broadcast %cst_7 : f32 to vector<10x1xf32>
    %14 = arith.divf %12, %13 : vector<10x1xf32>
    %cst_8 = arith.constant 9.99999997E-7 : f32
    %15 = vector.broadcast %cst_8 : f32 to vector<10x1xf32>
    %16 = arith.addf %14, %15 : vector<10x1xf32>
    %17 = math.rsqrt %16 : vector<10x1xf32>
    %18 = vector.broadcast %17 : vector<10x1xf32> to vector<10x32xf32>
    %19 = arith.mulf %9, %18 : vector<10x32xf32>
    %20 = vector.broadcast %1 : vector<1x32xf32> to vector<10x32xf32>
    %21 = arith.mulf %19, %20 : vector<10x32xf32>
    %22 = vector.broadcast %2 : vector<1x32xf32> to vector<10x32xf32>
    %23 = arith.addf %21, %22 : vector<10x32xf32>
    %24 = arith.truncf %23 : vector<10x32xf32> to vector<10x32xbf16>
    %c0_9 = arith.constant 0 : index
    %c0_10 = arith.constant 0 : index
    %25 = vector.load %arg4[%c0_9, %c0_10] : memref<32x32xbf16, #tpu.memory_space<vmem>>, vector<32x32xbf16>
    %cst_11 = arith.constant dense<0.000000e+00> : vector<10x32xf32>
    %26 = tpu.matmul %24, %25, %cst_11 {dimension_numbers = #tpu.dot_dimension_numbers<[1], [0], [0], [1], [0, 0, 1, 1], [], []>} : vector<10x32xbf16>, vector<32x32xbf16>, vector<10x32xf32> -> vector<10x32xf32>
    %c0_12 = arith.constant 0 : index
    %c0_13 = arith.constant 0 : index
    %27 = vector.load %arg7[%c0_12, %c0_13] : memref<1x32xf32, #tpu.memory_space<vmem>>, vector<1x32xf32>
    %28 = vector.broadcast %27 : vector<1x32xf32> to vector<10x32xf32>
    %29 = arith.addf %26, %28 : vector<10x32xf32>
    %30 = arith.truncf %29 : vector<10x32xf32> to vector<10x32xbf16>
    %c0_14 = arith.constant 0 : index
    %c0_15 = arith.constant 0 : index
    %31 = vector.load %arg10[%c0_14, %c0_15] : memref<10x32xbf16, #tpu.memory_space<vmem>>, vector<10x32xbf16>
    tpu.vector_store %arg10[%c0_14, %c0_15], %30 {strides = array<i32>} : memref<10x32xbf16, #tpu.memory_space<vmem>>, vector<10x32xbf16>,
    %c0_16 = arith.constant 0 : index
    %c0_17 = arith.constant 0 : index
    %32 = vector.load %arg5[%c0_16, %c0_17] : memref<32x32xbf16, #tpu.memory_space<vmem>>, vector<32x32xbf16>
    %cst_18 = arith.constant dense<0.000000e+00> : vector<10x32xf32>
    %33 = tpu.matmul %24, %32, %cst_18 {dimension_numbers = #tpu.dot_dimension_numbers<[1], [0], [0], [1], [0, 0, 1, 1], [], []>} : vector<10x32xbf16>, vector<32x32xbf16>, vector<10x32xf32> -> vector<10x32xf32>
    %c0_19 = arith.constant 0 : index
    %c0_20 = arith.constant 0 : index
    %34 = vector.load %arg8[%c0_19, %c0_20] : memref<1x32xf32, #tpu.memory_space<vmem>>, vector<1x32xf32>
    %35 = vector.broadcast %34 : vector<1x32xf32> to vector<10x32xf32>
    %36 = arith.addf %33, %35 : vector<10x32xf32>
    %37 = arith.truncf %36 : vector<10x32xf32> to vector<10x32xbf16>
    %c0_21 = arith.constant 0 : index
    %c0_22 = arith.constant 0 : index
    %38 = vector.load %arg11[%c0_21, %c0_22] : memref<10x32xbf16, #tpu.memory_space<vmem>>, vector<10x32xbf16>
    tpu.vector_store %arg11[%c0_21, %c0_22], %37 {strides = array<i32>} : memref<10x32xbf16, #tpu.memory_space<vmem>>, vector<10x32xbf16>,
    %c0_23 = arith.constant 0 : index
    %c0_24 = arith.constant 0 : index
    %39 = vector.load %arg6[%c0_23, %c0_24] : memref<32x32xbf16, #tpu.memory_space<vmem>>, vector<32x32xbf16>
    %cst_25 = arith.constant dense<0.000000e+00> : vector<10x32xf32>
    %40 = tpu.matmul %24, %39, %cst_25 {dimension_numbers = #tpu.dot_dimension_numbers<[1], [0], [0], [1], [0, 0, 1, 1], [], []>} : vector<10x32xbf16>, vector<32x32xbf16>, vector<10x32xf32> -> vector<10x32xf32>
    %c0_26 = arith.constant 0 : index
    %c0_27 = arith.constant 0 : index
    %41 = vector.load %arg9[%c0_26, %c0_27] : memref<1x32xf32, #tpu.memory_space<vmem>>, vector<1x32xf32>
    %42 = vector.broadcast %41 : vector<1x32xf32> to vector<10x32xf32>
    %43 = arith.addf %40, %42 : vector<10x32xf32>
    %44 = arith.truncf %43 : vector<10x32xf32> to vector<10x32xbf16>
    %c0_28 = arith.constant 0 : index
    %c0_29 = arith.constant 0 : index
    %45 = vector.load %arg12[%c0_28, %c0_29] : memref<10x32xbf16, #tpu.memory_space<vmem>>, vector<10x32xbf16>
    tpu.vector_store %arg12[%c0_28, %c0_29], %44 {strides = array<i32>} : memref<10x32xbf16, #tpu.memory_space<vmem>>, vector<10x32xbf16>,
    return
  }
  func.func @transform_0(%arg0: i32) -> (i32, i32) {
    %c0_i32 = arith.constant 0 : i32
    %c0_i32_0 = arith.constant 0 : i32
    return %arg0, %c0_i32 : i32, i32
  }
  func.func @transform_1(%arg0: i32) -> (i32, i32) {
    %c0_i32 = arith.constant 0 : i32
    %c0_i32_0 = arith.constant 0 : i32
    %c0_i32_1 = arith.constant 0 : i32
    return %c0_i32, %c0_i32_0 : i32, i32
  }
  func.func @transform_2(%arg0: i32) -> (i32, i32) {
    %c0_i32 = arith.constant 0 : i32
    %c0_i32_0 = arith.constant 0 : i32
    %c0_i32_1 = arith.constant 0 : i32
    return %c0_i32, %c0_i32_0 : i32, i32
  }
  func.func @transform_3(%arg0: i32) -> (i32, i32) {
    %c0_i32 = arith.constant 0 : i32
    %c0_i32_0 = arith.constant 0 : i32
    %c0_i32_1 = arith.constant 0 : i32
    return %c0_i32, %c0_i32_0 : i32, i32
  }
  func.func @transform_4(%arg0: i32) -> (i32, i32) {
    %c0_i32 = arith.constant 0 : i32
    %c0_i32_0 = arith.constant 0 : i32
    %c0_i32_1 = arith.constant 0 : i32
    return %c0_i32, %c0_i32_0 : i32, i32
  }
  func.func @transform_5(%arg0: i32) -> (i32, i32) {
    %c0_i32 = arith.constant 0 : i32
    %c0_i32_0 = arith.constant 0 : i32
    %c0_i32_1 = arith.constant 0 : i32
    return %c0_i32, %c0_i32_0 : i32, i32
  }
  func.func @transform_6(%arg0: i32) -> (i32, i32) {
    %c0_i32 = arith.constant 0 : i32
    %c0_i32_0 = arith.constant 0 : i32
    %c0_i32_1 = arith.constant 0 : i32
    return %c0_i32, %c0_i32_0 : i32, i32
  }
  func.func @transform_7(%arg0: i32) -> (i32, i32) {
    %c0_i32 = arith.constant 0 : i32
    %c0_i32_0 = arith.constant 0 : i32
    %c0_i32_1 = arith.constant 0 : i32
    return %c0_i32, %c0_i32_0 : i32, i32
  }
  func.func @transform_8(%arg0: i32) -> (i32, i32) {
    %c0_i32 = arith.constant 0 : i32
    %c0_i32_0 = arith.constant 0 : i32
    %c0_i32_1 = arith.constant 0 : i32
    return %c0_i32, %c0_i32_0 : i32, i32
  }
  func.func @transform_9(%arg0: i32) -> (i32, i32) {
    %c0_i32 = arith.constant 0 : i32
    %c0_i32_0 = arith.constant 0 : i32
    return %arg0, %c0_i32 : i32, i32
  }
  func.func @transform_10(%arg0: i32) -> (i32, i32) {
    %c0_i32 = arith.constant 0 : i32
    %c0_i32_0 = arith.constant 0 : i32
    return %arg0, %c0_i32 : i32, i32
  }
  func.func @transform_11(%arg0: i32) -> (i32, i32) {
    %c0_i32 = arith.constant 0 : i32
    %c0_i32_0 = arith.constant 0 : i32
    return %arg0, %c0_i32 : i32, i32
  }
}

module attributes {stable_mosaic.version = 11 : i64} {
  func.func @_attn_kernel(%arg0: i32, %arg1: memref<1x5x32xbf16, #tpu.memory_space<vmem>>, %arg2: memref<1x5x32xbf16, #tpu.memory_space<vmem>>, %arg3: memref<1x5x32xbf16, #tpu.memory_space<vmem>>, %arg4: memref<1x5x32xbf16, #tpu.memory_space<vmem>>) attributes {dimension_semantics = [#tpu.dimension_semantics<parallel>], iteration_bounds = array<i64: 2>, scalar_prefetch = 0 : i64, scratch_operands = 0 : i64, tpu.core_type = #tpu.core_type<tc>, window_params = [{transform_indices = @transform_0, window_bounds = array<i64: 1, 5, 32>}, {transform_indices = @transform_1, window_bounds = array<i64: 1, 5, 32>}, {transform_indices = @transform_2, window_bounds = array<i64: 1, 5, 32>}, {transform_indices = @transform_3, window_bounds = array<i64: 1, 5, 32>}]} {
    %c0 = arith.constant 0 : index
    %c0_0 = arith.constant 0 : index
    %c0_1 = arith.constant 0 : index
    %0 = vector.load %arg1[%c0, %c0_0, %c0_1] : memref<1x5x32xbf16, #tpu.memory_space<vmem>>, vector<1x5x32xbf16>
    %1 = vector.shape_cast %0 : vector<1x5x32xbf16> to vector<5x32xbf16>
    %c0_2 = arith.constant 0 : index
    %c0_3 = arith.constant 0 : index
    %c0_4 = arith.constant 0 : index
    %2 = vector.load %arg2[%c0_2, %c0_3, %c0_4] : memref<1x5x32xbf16, #tpu.memory_space<vmem>>, vector<1x5x32xbf16>
    %3 = vector.shape_cast %2 : vector<1x5x32xbf16> to vector<5x32xbf16>
    %c0_5 = arith.constant 0 : index
    %c0_6 = arith.constant 0 : index
    %c0_7 = arith.constant 0 : index
    %4 = vector.load %arg3[%c0_5, %c0_6, %c0_7] : memref<1x5x32xbf16, #tpu.memory_space<vmem>>, vector<1x5x32xbf16>
    %5 = vector.shape_cast %4 : vector<1x5x32xbf16> to vector<5x32xbf16>
    %6 = vector.extract_strided_slice %1 {offsets = [0, 0], sizes = [5, 8], strides = [1, 1]} : vector<5x32xbf16> to vector<5x8xbf16>
    %7 = vector.extract_strided_slice %3 {offsets = [0, 0], sizes = [5, 8], strides = [1, 1]} : vector<5x32xbf16> to vector<5x8xbf16>
    %cst = arith.constant dense<0.000000e+00> : vector<5x5xf32>
    %8 = tpu.matmul %6, %7, %cst {dimension_numbers = #tpu.dot_dimension_numbers<[1], [1], [0], [0], [0, 0, 1, 0], [], []>} : vector<5x8xbf16>, vector<5x8xbf16>, vector<5x5xf32> -> vector<5x5xf32>
    %cst_8 = arith.constant 0.353553385 : f32
    %9 = vector.broadcast %cst_8 : f32 to vector<5x5xf32>
    %10 = arith.mulf %8, %9 : vector<5x5xf32>
    %cst_9 = arith.constant dense<0xFF800000> : vector<5xf32>
    %11 = vector.multi_reduction <maximumf>, %10, %cst_9 [1] : vector<5x5xf32> to vector<5xf32>
    %12 = vector.shape_cast %11 : vector<5xf32> to vector<5x1xf32>
    %13 = vector.broadcast %12 : vector<5x1xf32> to vector<5x5xf32>
    %14 = arith.subf %10, %13 : vector<5x5xf32>
    %15 = math.exp %14 : vector<5x5xf32>
    %cst_10 = arith.constant dense<0.000000e+00> : vector<5xf32>
    %16 = vector.multi_reduction <add>, %15, %cst_10 [1] : vector<5x5xf32> to vector<5xf32>
    %17 = vector.shape_cast %16 : vector<5xf32> to vector<5x1xf32>
    %18 = tpu.reciprocal %17 {approx = true} : vector<5x1xf32> -> vector<5x1xf32>
    %19 = vector.broadcast %18 : vector<5x1xf32> to vector<5x5xf32>
    %20 = arith.mulf %15, %19 : vector<5x5xf32>
    %21 = arith.truncf %20 : vector<5x5xf32> to vector<5x5xbf16>
    %22 = vector.extract_strided_slice %5 {offsets = [0, 0], sizes = [5, 8], strides = [1, 1]} : vector<5x32xbf16> to vector<5x8xbf16>
    %cst_11 = arith.constant dense<0.000000e+00> : vector<5x8xf32>
    %23 = tpu.matmul %21, %22, %cst_11 {dimension_numbers = #tpu.dot_dimension_numbers<[1], [0], [0], [1], [0, 0, 1, 1], [], []>} : vector<5x5xbf16>, vector<5x8xbf16>, vector<5x8xf32> -> vector<5x8xf32>
    %24 = arith.truncf %23 : vector<5x8xf32> to vector<5x8xbf16>
    %c0_12 = arith.constant 0 : index
    %c0_13 = arith.constant 0 : index
    %c0_14 = arith.constant 0 : index
    %25 = vector.load %arg4[%c0_12, %c0_13, %c0_14] : memref<1x5x32xbf16, #tpu.memory_space<vmem>>, vector<1x5x8xbf16>
    %26 = vector.shape_cast %25 : vector<1x5x8xbf16> to vector<5x8xbf16>
    %27 = vector.shape_cast %24 : vector<5x8xbf16> to vector<1x5x8xbf16>
    tpu.vector_store %arg4[%c0_12, %c0_13, %c0_14], %27 {strides = array<i32>} : memref<1x5x32xbf16, #tpu.memory_space<vmem>>, vector<1x5x8xbf16>,
    %28 = vector.extract_strided_slice %1 {offsets = [0, 8], sizes = [5, 8], strides = [1, 1]} : vector<5x32xbf16> to vector<5x8xbf16>
    %29 = vector.extract_strided_slice %3 {offsets = [0, 8], sizes = [5, 8], strides = [1, 1]} : vector<5x32xbf16> to vector<5x8xbf16>
    %cst_15 = arith.constant dense<0.000000e+00> : vector<5x5xf32>
    %30 = tpu.matmul %28, %29, %cst_15 {dimension_numbers = #tpu.dot_dimension_numbers<[1], [1], [0], [0], [0, 0, 1, 0], [], []>} : vector<5x8xbf16>, vector<5x8xbf16>, vector<5x5xf32> -> vector<5x5xf32>
    %cst_16 = arith.constant 0.353553385 : f32
    %31 = vector.broadcast %cst_16 : f32 to vector<5x5xf32>
    %32 = arith.mulf %30, %31 : vector<5x5xf32>
    %cst_17 = arith.constant dense<0xFF800000> : vector<5xf32>
    %33 = vector.multi_reduction <maximumf>, %32, %cst_17 [1] : vector<5x5xf32> to vector<5xf32>
    %34 = vector.shape_cast %33 : vector<5xf32> to vector<5x1xf32>
    %35 = vector.broadcast %34 : vector<5x1xf32> to vector<5x5xf32>
    %36 = arith.subf %32, %35 : vector<5x5xf32>
    %37 = math.exp %36 : vector<5x5xf32>
    %cst_18 = arith.constant dense<0.000000e+00> : vector<5xf32>
    %38 = vector.multi_reduction <add>, %37, %cst_18 [1] : vector<5x5xf32> to vector<5xf32>
    %39 = vector.shape_cast %38 : vector<5xf32> to vector<5x1xf32>
    %40 = tpu.reciprocal %39 {approx = true} : vector<5x1xf32> -> vector<5x1xf32>
    %41 = vector.broadcast %40 : vector<5x1xf32> to vector<5x5xf32>
    %42 = arith.mulf %37, %41 : vector<5x5xf32>
    %43 = arith.truncf %42 : vector<5x5xf32> to vector<5x5xbf16>
    %44 = vector.extract_strided_slice %5 {offsets = [0, 8], sizes = [5, 8], strides = [1, 1]} : vector<5x32xbf16> to vector<5x8xbf16>
    %cst_19 = arith.constant dense<0.000000e+00> : vector<5x8xf32>
    %45 = tpu.matmul %43, %44, %cst_19 {dimension_numbers = #tpu.dot_dimension_numbers<[1], [0], [0], [1], [0, 0, 1, 1], [], []>} : vector<5x5xbf16>, vector<5x8xbf16>, vector<5x8xf32> -> vector<5x8xf32>
    %46 = arith.truncf %45 : vector<5x8xf32> to vector<5x8xbf16>
    %c0_20 = arith.constant 0 : index
    %c0_21 = arith.constant 0 : index
    %c8 = arith.constant 8 : index
    %47 = vector.load %arg4[%c0_20, %c0_21, %c8] : memref<1x5x32xbf16, #tpu.memory_space<vmem>>, vector<1x5x8xbf16>
    %48 = vector.shape_cast %47 : vector<1x5x8xbf16> to vector<5x8xbf16>
    %49 = vector.shape_cast %46 : vector<5x8xbf16> to vector<1x5x8xbf16>
    tpu.vector_store %arg4[%c0_20, %c0_21, %c8], %49 {strides = array<i32>} : memref<1x5x32xbf16, #tpu.memory_space<vmem>>, vector<1x5x8xbf16>,
    %50 = vector.extract_strided_slice %1 {offsets = [0, 16], sizes = [5, 8], strides = [1, 1]} : vector<5x32xbf16> to vector<5x8xbf16>
    %51 = vector.extract_strided_slice %3 {offsets = [0, 16], sizes = [5, 8], strides = [1, 1]} : vector<5x32xbf16> to vector<5x8xbf16>
    %cst_22 = arith.constant dense<0.000000e+00> : vector<5x5xf32>
    %52 = tpu.matmul %50, %51, %cst_22 {dimension_numbers = #tpu.dot_dimension_numbers<[1], [1], [0], [0], [0, 0, 1, 0], [], []>} : vector<5x8xbf16>, vector<5x8xbf16>, vector<5x5xf32> -> vector<5x5xf32>
    %cst_23 = arith.constant 0.353553385 : f32
    %53 = vector.broadcast %cst_23 : f32 to vector<5x5xf32>
    %54 = arith.mulf %52, %53 : vector<5x5xf32>
    %cst_24 = arith.constant dense<0xFF800000> : vector<5xf32>
    %55 = vector.multi_reduction <maximumf>, %54, %cst_24 [1] : vector<5x5xf32> to vector<5xf32>
    %56 = vector.shape_cast %55 : vector<5xf32> to vector<5x1xf32>
    %57 = vector.broadcast %56 : vector<5x1xf32> to vector<5x5xf32>
    %58 = arith.subf %54, %57 : vector<5x5xf32>
    %59 = math.exp %58 : vector<5x5xf32>
    %cst_25 = arith.constant dense<0.000000e+00> : vector<5xf32>
    %60 = vector.multi_reduction <add>, %59, %cst_25 [1] : vector<5x5xf32> to vector<5xf32>
    %61 = vector.shape_cast %60 : vector<5xf32> to vector<5x1xf32>
    %62 = tpu.reciprocal %61 {approx = true} : vector<5x1xf32> -> vector<5x1xf32>
    %63 = vector.broadcast %62 : vector<5x1xf32> to vector<5x5xf32>
    %64 = arith.mulf %59, %63 : vector<5x5xf32>
    %65 = arith.truncf %64 : vector<5x5xf32> to vector<5x5xbf16>
    %66 = vector.extract_strided_slice %5 {offsets = [0, 16], sizes = [5, 8], strides = [1, 1]} : vector<5x32xbf16> to vector<5x8xbf16>
    %cst_26 = arith.constant dense<0.000000e+00> : vector<5x8xf32>
    %67 = tpu.matmul %65, %66, %cst_26 {dimension_numbers = #tpu.dot_dimension_numbers<[1], [0], [0], [1], [0, 0, 1, 1], [], []>} : vector<5x5xbf16>, vector<5x8xbf16>, vector<5x8xf32> -> vector<5x8xf32>
    %68 = arith.truncf %67 : vector<5x8xf32> to vector<5x8xbf16>
    %c0_27 = arith.constant 0 : index
    %c0_28 = arith.constant 0 : index
    %c16 = arith.constant 16 : index
    %69 = vector.load %arg4[%c0_27, %c0_28, %c16] : memref<1x5x32xbf16, #tpu.memory_space<vmem>>, vector<1x5x8xbf16>
    %70 = vector.shape_cast %69 : vector<1x5x8xbf16> to vector<5x8xbf16>
    %71 = vector.shape_cast %68 : vector<5x8xbf16> to vector<1x5x8xbf16>
    tpu.vector_store %arg4[%c0_27, %c0_28, %c16], %71 {strides = array<i32>} : memref<1x5x32xbf16, #tpu.memory_space<vmem>>, vector<1x5x8xbf16>,
    %72 = vector.extract_strided_slice %1 {offsets = [0, 24], sizes = [5, 8], strides = [1, 1]} : vector<5x32xbf16> to vector<5x8xbf16>
    %73 = vector.extract_strided_slice %3 {offsets = [0, 24], sizes = [5, 8], strides = [1, 1]} : vector<5x32xbf16> to vector<5x8xbf16>
    %cst_29 = arith.constant dense<0.000000e+00> : vector<5x5xf32>
    %74 = tpu.matmul %72, %73, %cst_29 {dimension_numbers = #tpu.dot_dimension_numbers<[1], [1], [0], [0], [0, 0, 1, 0], [], []>} : vector<5x8xbf16>, vector<5x8xbf16>, vector<5x5xf32> -> vector<5x5xf32>
    %cst_30 = arith.constant 0.353553385 : f32
    %75 = vector.broadcast %cst_30 : f32 to vector<5x5xf32>
    %76 = arith.mulf %74, %75 : vector<5x5xf32>
    %cst_31 = arith.constant dense<0xFF800000> : vector<5xf32>
    %77 = vector.multi_reduction <maximumf>, %76, %cst_31 [1] : vector<5x5xf32> to vector<5xf32>
    %78 = vector.shape_cast %77 : vector<5xf32> to vector<5x1xf32>
    %79 = vector.broadcast %78 : vector<5x1xf32> to vector<5x5xf32>
    %80 = arith.subf %76, %79 : vector<5x5xf32>
    %81 = math.exp %80 : vector<5x5xf32>
    %cst_32 = arith.constant dense<0.000000e+00> : vector<5xf32>
    %82 = vector.multi_reduction <add>, %81, %cst_32 [1] : vector<5x5xf32> to vector<5xf32>
    %83 = vector.shape_cast %82 : vector<5xf32> to vector<5x1xf32>
    %84 = tpu.reciprocal %83 {approx = true} : vector<5x1xf32> -> vector<5x1xf32>
    %85 = vector.broadcast %84 : vector<5x1xf32> to vector<5x5xf32>
    %86 = arith.mulf %81, %85 : vector<5x5xf32>
    %87 = arith.truncf %86 : vector<5x5xf32> to vector<5x5xbf16>
    %88 = vector.extract_strided_slice %5 {offsets = [0, 24], sizes = [5, 8], strides = [1, 1]} : vector<5x32xbf16> to vector<5x8xbf16>
    %cst_33 = arith.constant dense<0.000000e+00> : vector<5x8xf32>
    %89 = tpu.matmul %87, %88, %cst_33 {dimension_numbers = #tpu.dot_dimension_numbers<[1], [0], [0], [1], [0, 0, 1, 1], [], []>} : vector<5x5xbf16>, vector<5x8xbf16>, vector<5x8xf32> -> vector<5x8xf32>
    %90 = arith.truncf %89 : vector<5x8xf32> to vector<5x8xbf16>
    %c0_34 = arith.constant 0 : index
    %c0_35 = arith.constant 0 : index
    %c24 = arith.constant 24 : index
    %91 = vector.load %arg4[%c0_34, %c0_35, %c24] : memref<1x5x32xbf16, #tpu.memory_space<vmem>>, vector<1x5x8xbf16>
    %92 = vector.shape_cast %91 : vector<1x5x8xbf16> to vector<5x8xbf16>
    %93 = vector.shape_cast %90 : vector<5x8xbf16> to vector<1x5x8xbf16>
    tpu.vector_store %arg4[%c0_34, %c0_35, %c24], %93 {strides = array<i32>} : memref<1x5x32xbf16, #tpu.memory_space<vmem>>, vector<1x5x8xbf16>,
    return
  }
  func.func @transform_0(%arg0: i32) -> (i32, i32, i32) {
    %c0_i32 = arith.constant 0 : i32
    %c0_i32_0 = arith.constant 0 : i32
    %c0_i32_1 = arith.constant 0 : i32
    return %arg0, %c0_i32, %c0_i32_0 : i32, i32, i32
  }
  func.func @transform_1(%arg0: i32) -> (i32, i32, i32) {
    %c0_i32 = arith.constant 0 : i32
    %c0_i32_0 = arith.constant 0 : i32
    %c0_i32_1 = arith.constant 0 : i32
    return %arg0, %c0_i32, %c0_i32_0 : i32, i32, i32
  }
  func.func @transform_2(%arg0: i32) -> (i32, i32, i32) {
    %c0_i32 = arith.constant 0 : i32
    %c0_i32_0 = arith.constant 0 : i32
    %c0_i32_1 = arith.constant 0 : i32
    return %arg0, %c0_i32, %c0_i32_0 : i32, i32, i32
  }
  func.func @transform_3(%arg0: i32) -> (i32, i32, i32) {
    %c0_i32 = arith.constant 0 : i32
    %c0_i32_0 = arith.constant 0 : i32
    %c0_i32_1 = arith.constant 0 : i32
    return %arg0, %c0_i32, %c0_i32_0 : i32, i32, i32
  }
}

module attributes {stable_mosaic.version = 11 : i64} {
  func.func @_mm_bias_res_kernel(%arg0: i32, %arg1: i32, %arg2: memref<10x32xbf16, #tpu.memory_space<vmem>>, %arg3: memref<32x32xbf16, #tpu.memory_space<vmem>>, %arg4: memref<1x32xf32, #tpu.memory_space<vmem>>, %arg5: memref<10x32xbf16, #tpu.memory_space<vmem>>, %arg6: memref<10x32xbf16, #tpu.memory_space<vmem>>) attributes {dimension_semantics = [#tpu.dimension_semantics<parallel>, #tpu.dimension_semantics<parallel>], iteration_bounds = array<i64: 1, 1>, scalar_prefetch = 0 : i64, scratch_operands = 0 : i64, tpu.core_type = #tpu.core_type<tc>, window_params = [{transform_indices = @transform_0, window_bounds = array<i64: 10, 32>}, {transform_indices = @transform_1, window_bounds = array<i64: 32, 32>}, {transform_indices = @transform_2, window_bounds = array<i64: 1, 32>}, {transform_indices = @transform_3, window_bounds = array<i64: 10, 32>}, {transform_indices = @transform_4, window_bounds = array<i64: 10, 32>}]} {
    %c0 = arith.constant 0 : index
    %c0_0 = arith.constant 0 : index
    %0 = vector.load %arg2[%c0, %c0_0] : memref<10x32xbf16, #tpu.memory_space<vmem>>, vector<10x32xbf16>
    %c0_1 = arith.constant 0 : index
    %c0_2 = arith.constant 0 : index
    %1 = vector.load %arg3[%c0_1, %c0_2] : memref<32x32xbf16, #tpu.memory_space<vmem>>, vector<32x32xbf16>
    %cst = arith.constant dense<0.000000e+00> : vector<10x32xf32>
    %2 = tpu.matmul %0, %1, %cst {dimension_numbers = #tpu.dot_dimension_numbers<[1], [0], [0], [1], [0, 0, 1, 1], [], []>} : vector<10x32xbf16>, vector<32x32xbf16>, vector<10x32xf32> -> vector<10x32xf32>
    %c0_3 = arith.constant 0 : index
    %c0_4 = arith.constant 0 : index
    %3 = vector.load %arg4[%c0_3, %c0_4] : memref<1x32xf32, #tpu.memory_space<vmem>>, vector<1x32xf32>
    %4 = vector.broadcast %3 : vector<1x32xf32> to vector<10x32xf32>
    %5 = arith.addf %2, %4 : vector<10x32xf32>
    %c0_5 = arith.constant 0 : index
    %c0_6 = arith.constant 0 : index
    %6 = vector.load %arg5[%c0_5, %c0_6] : memref<10x32xbf16, #tpu.memory_space<vmem>>, vector<10x32xbf16>
    %7 = arith.extf %6 : vector<10x32xbf16> to vector<10x32xf32>
    %8 = arith.addf %5, %7 : vector<10x32xf32>
    %9 = arith.truncf %8 : vector<10x32xf32> to vector<10x32xbf16>
    %c0_7 = arith.constant 0 : index
    %c0_8 = arith.constant 0 : index
    %10 = vector.load %arg6[%c0_7, %c0_8] : memref<10x32xbf16, #tpu.memory_space<vmem>>, vector<10x32xbf16>
    tpu.vector_store %arg6[%c0_7, %c0_8], %9 {strides = array<i32>} : memref<10x32xbf16, #tpu.memory_space<vmem>>, vector<10x32xbf16>,
    return
  }
  func.func @transform_0(%arg0: i32, %arg1: i32) -> (i32, i32) {
    %c0_i32 = arith.constant 0 : i32
    %c0_i32_0 = arith.constant 0 : i32
    return %arg0, %c0_i32 : i32, i32
  }
  func.func @transform_1(%arg0: i32, %arg1: i32) -> (i32, i32) {
    %c0_i32 = arith.constant 0 : i32
    %c0_i32_0 = arith.constant 0 : i32
    return %c0_i32, %arg1 : i32, i32
  }
  func.func @transform_2(%arg0: i32, %arg1: i32) -> (i32, i32) {
    %c0_i32 = arith.constant 0 : i32
    %c0_i32_0 = arith.constant 0 : i32
    return %c0_i32, %arg1 : i32, i32
  }
  func.func @transform_3(%arg0: i32, %arg1: i32) -> (i32, i32) {
    %c0_i32 = arith.constant 0 : i32
    return %arg0, %arg1 : i32, i32
  }
  func.func @transform_4(%arg0: i32, %arg1: i32) -> (i32, i32) {
    %c0_i32 = arith.constant 0 : i32
    return %arg0, %arg1 : i32, i32
  }
}

module attributes {stable_mosaic.version = 11 : i64} {
  func.func @_ln_mm_kernel(%arg0: i32, %arg1: i32, %arg2: memref<10x32xbf16, #tpu.memory_space<vmem>>, %arg3: memref<1x32xf32, #tpu.memory_space<vmem>>, %arg4: memref<1x32xf32, #tpu.memory_space<vmem>>, %arg5: memref<32x64xbf16, #tpu.memory_space<vmem>>, %arg6: memref<1x64xf32, #tpu.memory_space<vmem>>, %arg7: memref<10x64xbf16, #tpu.memory_space<vmem>>) attributes {dimension_semantics = [#tpu.dimension_semantics<parallel>, #tpu.dimension_semantics<parallel>], iteration_bounds = array<i64: 1, 1>, scalar_prefetch = 0 : i64, scratch_operands = 0 : i64, tpu.core_type = #tpu.core_type<tc>, window_params = [{transform_indices = @transform_0, window_bounds = array<i64: 10, 32>}, {pipeline_mode = #tpu.pipeline_mode<synchronous>, transform_indices = @transform_1, window_bounds = array<i64: 1, 32>}, {pipeline_mode = #tpu.pipeline_mode<synchronous>, transform_indices = @transform_2, window_bounds = array<i64: 1, 32>}, {transform_indices = @transform_3, window_bounds = array<i64: 32, 64>}, {transform_indices = @transform_4, window_bounds = array<i64: 1, 64>}, {transform_indices = @transform_5, window_bounds = array<i64: 10, 64>}]} {
    %c0 = arith.constant 0 : index
    %c0_0 = arith.constant 0 : index
    %0 = vector.load %arg2[%c0, %c0_0] : memref<10x32xbf16, #tpu.memory_space<vmem>>, vector<10x32xbf16>
    %c0_1 = arith.constant 0 : index
    %c0_2 = arith.constant 0 : index
    %1 = vector.load %arg3[%c0_1, %c0_2] : memref<1x32xf32, #tpu.memory_space<vmem>>, vector<1x32xf32>
    %c0_3 = arith.constant 0 : index
    %c0_4 = arith.constant 0 : index
    %2 = vector.load %arg4[%c0_3, %c0_4] : memref<1x32xf32, #tpu.memory_space<vmem>>, vector<1x32xf32>
    %3 = arith.extf %0 : vector<10x32xbf16> to vector<10x32xf32>
    %cst = arith.constant dense<0.000000e+00> : vector<10xf32>
    %4 = vector.multi_reduction <add>, %3, %cst [1] : vector<10x32xf32> to vector<10xf32>
    %5 = vector.shape_cast %4 : vector<10xf32> to vector<10x1xf32>
    %cst_5 = arith.constant 3.200000e+01 : f32
    %6 = vector.broadcast %cst_5 : f32 to vector<10x1xf32>
    %7 = arith.divf %5, %6 : vector<10x1xf32>
    %8 = vector.broadcast %7 : vector<10x1xf32> to vector<10x32xf32>
    %9 = arith.subf %3, %8 : vector<10x32xf32>
    %10 = arith.mulf %9, %9 : vector<10x32xf32>
    %cst_6 = arith.constant dense<0.000000e+00> : vector<10xf32>
    %11 = vector.multi_reduction <add>, %10, %cst_6 [1] : vector<10x32xf32> to vector<10xf32>
    %12 = vector.shape_cast %11 : vector<10xf32> to vector<10x1xf32>
    %cst_7 = arith.constant 3.200000e+01 : f32
    %13 = vector.broadcast %cst_7 : f32 to vector<10x1xf32>
    %14 = arith.divf %12, %13 : vector<10x1xf32>
    %cst_8 = arith.constant 9.99999997E-7 : f32
    %15 = vector.broadcast %cst_8 : f32 to vector<10x1xf32>
    %16 = arith.addf %14, %15 : vector<10x1xf32>
    %17 = math.rsqrt %16 : vector<10x1xf32>
    %18 = vector.broadcast %17 : vector<10x1xf32> to vector<10x32xf32>
    %19 = arith.mulf %9, %18 : vector<10x32xf32>
    %20 = vector.broadcast %1 : vector<1x32xf32> to vector<10x32xf32>
    %21 = arith.mulf %19, %20 : vector<10x32xf32>
    %22 = vector.broadcast %2 : vector<1x32xf32> to vector<10x32xf32>
    %23 = arith.addf %21, %22 : vector<10x32xf32>
    %24 = arith.truncf %23 : vector<10x32xf32> to vector<10x32xbf16>
    %c0_9 = arith.constant 0 : index
    %c0_10 = arith.constant 0 : index
    %25 = vector.load %arg5[%c0_9, %c0_10] : memref<32x64xbf16, #tpu.memory_space<vmem>>, vector<32x64xbf16>
    %cst_11 = arith.constant dense<0.000000e+00> : vector<10x64xf32>
    %26 = tpu.matmul %24, %25, %cst_11 {dimension_numbers = #tpu.dot_dimension_numbers<[1], [0], [0], [1], [0, 0, 1, 1], [], []>} : vector<10x32xbf16>, vector<32x64xbf16>, vector<10x64xf32> -> vector<10x64xf32>
    %c0_12 = arith.constant 0 : index
    %c0_13 = arith.constant 0 : index
    %27 = vector.load %arg6[%c0_12, %c0_13] : memref<1x64xf32, #tpu.memory_space<vmem>>, vector<1x64xf32>
    %28 = vector.broadcast %27 : vector<1x64xf32> to vector<10x64xf32>
    %29 = arith.addf %26, %28 : vector<10x64xf32>
    %30 = arith.mulf %29, %29 : vector<10x64xf32>
    %31 = arith.mulf %29, %30 : vector<10x64xf32>
    %cst_14 = arith.constant 4.471500e-02 : f32
    %32 = vector.broadcast %cst_14 : f32 to vector<10x64xf32>
    %33 = arith.mulf %32, %31 : vector<10x64xf32>
    %34 = arith.addf %29, %33 : vector<10x64xf32>
    %cst_15 = arith.constant 0.797884583 : f32
    %35 = vector.broadcast %cst_15 : f32 to vector<10x64xf32>
    %36 = arith.mulf %35, %34 : vector<10x64xf32>
    %37 = math.tanh %36 : vector<10x64xf32>
    %cst_16 = arith.constant 1.000000e+00 : f32
    %38 = vector.broadcast %cst_16 : f32 to vector<10x64xf32>
    %39 = arith.addf %38, %37 : vector<10x64xf32>
    %cst_17 = arith.constant 5.000000e-01 : f32
    %40 = vector.broadcast %cst_17 : f32 to vector<10x64xf32>
    %41 = arith.mulf %40, %39 : vector<10x64xf32>
    %42 = arith.mulf %29, %41 : vector<10x64xf32>
    %43 = arith.truncf %42 : vector<10x64xf32> to vector<10x64xbf16>
    %c0_18 = arith.constant 0 : index
    %c0_19 = arith.constant 0 : index
    %44 = vector.load %arg7[%c0_18, %c0_19] : memref<10x64xbf16, #tpu.memory_space<vmem>>, vector<10x64xbf16>
    tpu.vector_store %arg7[%c0_18, %c0_19], %43 {strides = array<i32>} : memref<10x64xbf16, #tpu.memory_space<vmem>>, vector<10x64xbf16>,
    return
  }
  func.func @transform_0(%arg0: i32, %arg1: i32) -> (i32, i32) {
    %c0_i32 = arith.constant 0 : i32
    %c0_i32_0 = arith.constant 0 : i32
    return %arg0, %c0_i32 : i32, i32
  }
  func.func @transform_1(%arg0: i32, %arg1: i32) -> (i32, i32) {
    %c0_i32 = arith.constant 0 : i32
    %c0_i32_0 = arith.constant 0 : i32
    %c0_i32_1 = arith.constant 0 : i32
    return %c0_i32, %c0_i32_0 : i32, i32
  }
  func.func @transform_2(%arg0: i32, %arg1: i32) -> (i32, i32) {
    %c0_i32 = arith.constant 0 : i32
    %c0_i32_0 = arith.constant 0 : i32
    %c0_i32_1 = arith.constant 0 : i32
    return %c0_i32, %c0_i32_0 : i32, i32
  }
  func.func @transform_3(%arg0: i32, %arg1: i32) -> (i32, i32) {
    %c0_i32 = arith.constant 0 : i32
    %c0_i32_0 = arith.constant 0 : i32
    return %c0_i32, %arg1 : i32, i32
  }
  func.func @transform_4(%arg0: i32, %arg1: i32) -> (i32, i32) {
    %c0_i32 = arith.constant 0 : i32
    %c0_i32_0 = arith.constant 0 : i32
    return %c0_i32, %arg1 : i32, i32
  }
  func.func @transform_5(%arg0: i32, %arg1: i32) -> (i32, i32) {
    %c0_i32 = arith.constant 0 : i32
    return %arg0, %arg1 : i32, i32
  }
}

module attributes {stable_mosaic.version = 11 : i64} {
  func.func @_mm_bias_res_kernel(%arg0: i32, %arg1: i32, %arg2: memref<10x64xbf16, #tpu.memory_space<vmem>>, %arg3: memref<64x32xbf16, #tpu.memory_space<vmem>>, %arg4: memref<1x32xf32, #tpu.memory_space<vmem>>, %arg5: memref<10x32xbf16, #tpu.memory_space<vmem>>, %arg6: memref<10x32xbf16, #tpu.memory_space<vmem>>) attributes {dimension_semantics = [#tpu.dimension_semantics<parallel>, #tpu.dimension_semantics<parallel>], iteration_bounds = array<i64: 1, 1>, scalar_prefetch = 0 : i64, scratch_operands = 0 : i64, tpu.core_type = #tpu.core_type<tc>, window_params = [{transform_indices = @transform_0, window_bounds = array<i64: 10, 64>}, {transform_indices = @transform_1, window_bounds = array<i64: 64, 32>}, {transform_indices = @transform_2, window_bounds = array<i64: 1, 32>}, {transform_indices = @transform_3, window_bounds = array<i64: 10, 32>}, {transform_indices = @transform_4, window_bounds = array<i64: 10, 32>}]} {
    %c0 = arith.constant 0 : index
    %c0_0 = arith.constant 0 : index
    %0 = vector.load %arg2[%c0, %c0_0] : memref<10x64xbf16, #tpu.memory_space<vmem>>, vector<10x64xbf16>
    %c0_1 = arith.constant 0 : index
    %c0_2 = arith.constant 0 : index
    %1 = vector.load %arg3[%c0_1, %c0_2] : memref<64x32xbf16, #tpu.memory_space<vmem>>, vector<64x32xbf16>
    %cst = arith.constant dense<0.000000e+00> : vector<10x32xf32>
    %2 = tpu.matmul %0, %1, %cst {dimension_numbers = #tpu.dot_dimension_numbers<[1], [0], [0], [1], [0, 0, 1, 1], [], []>} : vector<10x64xbf16>, vector<64x32xbf16>, vector<10x32xf32> -> vector<10x32xf32>
    %c0_3 = arith.constant 0 : index
    %c0_4 = arith.constant 0 : index
    %3 = vector.load %arg4[%c0_3, %c0_4] : memref<1x32xf32, #tpu.memory_space<vmem>>, vector<1x32xf32>
    %4 = vector.broadcast %3 : vector<1x32xf32> to vector<10x32xf32>
    %5 = arith.addf %2, %4 : vector<10x32xf32>
    %c0_5 = arith.constant 0 : index
    %c0_6 = arith.constant 0 : index
    %6 = vector.load %arg5[%c0_5, %c0_6] : memref<10x32xbf16, #tpu.memory_space<vmem>>, vector<10x32xbf16>
    %7 = arith.extf %6 : vector<10x32xbf16> to vector<10x32xf32>
    %8 = arith.addf %5, %7 : vector<10x32xf32>
    %9 = arith.truncf %8 : vector<10x32xf32> to vector<10x32xbf16>
    %c0_7 = arith.constant 0 : index
    %c0_8 = arith.constant 0 : index
    %10 = vector.load %arg6[%c0_7, %c0_8] : memref<10x32xbf16, #tpu.memory_space<vmem>>, vector<10x32xbf16>
    tpu.vector_store %arg6[%c0_7, %c0_8], %9 {strides = array<i32>} : memref<10x32xbf16, #tpu.memory_space<vmem>>, vector<10x32xbf16>,
    return
  }
  func.func @transform_0(%arg0: i32, %arg1: i32) -> (i32, i32) {
    %c0_i32 = arith.constant 0 : i32
    %c0_i32_0 = arith.constant 0 : i32
    return %arg0, %c0_i32 : i32, i32
  }
  func.func @transform_1(%arg0: i32, %arg1: i32) -> (i32, i32) {
    %c0_i32 = arith.constant 0 : i32
    %c0_i32_0 = arith.constant 0 : i32
    return %c0_i32, %arg1 : i32, i32
  }
  func.func @transform_2(%arg0: i32, %arg1: i32) -> (i32, i32) {
    %c0_i32 = arith.constant 0 : i32
    %c0_i32_0 = arith.constant 0 : i32
    return %c0_i32, %arg1 : i32, i32
  }
  func.func @transform_3(%arg0: i32, %arg1: i32) -> (i32, i32) {
    %c0_i32 = arith.constant 0 : i32
    return %arg0, %arg1 : i32, i32
  }
  func.func @transform_4(%arg0: i32, %arg1: i32) -> (i32, i32) {
    %c0_i32 = arith.constant 0 : i32
    return %arg0, %arg1 : i32, i32
  }
}

module attributes {stable_mosaic.version = 11 : i64} {
  func.func @_ln_kernel(%arg0: i32, %arg1: memref<10x32xbf16, #tpu.memory_space<vmem>>, %arg2: memref<1x32xf32, #tpu.memory_space<vmem>>, %arg3: memref<1x32xf32, #tpu.memory_space<vmem>>, %arg4: memref<10x32xf32, #tpu.memory_space<vmem>>) attributes {dimension_semantics = [#tpu.dimension_semantics<parallel>], iteration_bounds = array<i64: 1>, scalar_prefetch = 0 : i64, scratch_operands = 0 : i64, tpu.core_type = #tpu.core_type<tc>, window_params = [{transform_indices = @transform_0, window_bounds = array<i64: 10, 32>}, {pipeline_mode = #tpu.pipeline_mode<synchronous>, transform_indices = @transform_1, window_bounds = array<i64: 1, 32>}, {pipeline_mode = #tpu.pipeline_mode<synchronous>, transform_indices = @transform_2, window_bounds = array<i64: 1, 32>}, {transform_indices = @transform_3, window_bounds = array<i64: 10, 32>}]} {
    %c0 = arith.constant 0 : index
    %c0_0 = arith.constant 0 : index
    %0 = vector.load %arg1[%c0, %c0_0] : memref<10x32xbf16, #tpu.memory_space<vmem>>, vector<10x32xbf16>
    %c0_1 = arith.constant 0 : index
    %c0_2 = arith.constant 0 : index
    %1 = vector.load %arg2[%c0_1, %c0_2] : memref<1x32xf32, #tpu.memory_space<vmem>>, vector<1x32xf32>
    %c0_3 = arith.constant 0 : index
    %c0_4 = arith.constant 0 : index
    %2 = vector.load %arg3[%c0_3, %c0_4] : memref<1x32xf32, #tpu.memory_space<vmem>>, vector<1x32xf32>
    %3 = arith.extf %0 : vector<10x32xbf16> to vector<10x32xf32>
    %cst = arith.constant dense<0.000000e+00> : vector<10xf32>
    %4 = vector.multi_reduction <add>, %3, %cst [1] : vector<10x32xf32> to vector<10xf32>
    %5 = vector.shape_cast %4 : vector<10xf32> to vector<10x1xf32>
    %cst_5 = arith.constant 3.200000e+01 : f32
    %6 = vector.broadcast %cst_5 : f32 to vector<10x1xf32>
    %7 = arith.divf %5, %6 : vector<10x1xf32>
    %8 = vector.broadcast %7 : vector<10x1xf32> to vector<10x32xf32>
    %9 = arith.subf %3, %8 : vector<10x32xf32>
    %10 = arith.mulf %9, %9 : vector<10x32xf32>
    %cst_6 = arith.constant dense<0.000000e+00> : vector<10xf32>
    %11 = vector.multi_reduction <add>, %10, %cst_6 [1] : vector<10x32xf32> to vector<10xf32>
    %12 = vector.shape_cast %11 : vector<10xf32> to vector<10x1xf32>
    %cst_7 = arith.constant 3.200000e+01 : f32
    %13 = vector.broadcast %cst_7 : f32 to vector<10x1xf32>
    %14 = arith.divf %12, %13 : vector<10x1xf32>
    %cst_8 = arith.constant 9.99999997E-7 : f32
    %15 = vector.broadcast %cst_8 : f32 to vector<10x1xf32>
    %16 = arith.addf %14, %15 : vector<10x1xf32>
    %17 = math.rsqrt %16 : vector<10x1xf32>
    %18 = vector.broadcast %17 : vector<10x1xf32> to vector<10x32xf32>
    %19 = arith.mulf %9, %18 : vector<10x32xf32>
    %20 = vector.broadcast %1 : vector<1x32xf32> to vector<10x32xf32>
    %21 = arith.mulf %19, %20 : vector<10x32xf32>
    %22 = vector.broadcast %2 : vector<1x32xf32> to vector<10x32xf32>
    %23 = arith.addf %21, %22 : vector<10x32xf32>
    %c0_9 = arith.constant 0 : index
    %c0_10 = arith.constant 0 : index
    %24 = vector.load %arg4[%c0_9, %c0_10] : memref<10x32xf32, #tpu.memory_space<vmem>>, vector<10x32xf32>
    tpu.vector_store %arg4[%c0_9, %c0_10], %23 {strides = array<i32>} : memref<10x32xf32, #tpu.memory_space<vmem>>, vector<10x32xf32>,
    return
  }
  func.func @transform_0(%arg0: i32) -> (i32, i32) {
    %c0_i32 = arith.constant 0 : i32
    %c0_i32_0 = arith.constant 0 : i32
    return %arg0, %c0_i32 : i32, i32
  }
  func.func @transform_1(%arg0: i32) -> (i32, i32) {
    %c0_i32 = arith.constant 0 : i32
    %c0_i32_0 = arith.constant 0 : i32
    %c0_i32_1 = arith.constant 0 : i32
    return %c0_i32, %c0_i32_0 : i32, i32
  }
  func.func @transform_2(%arg0: i32) -> (i32, i32) {
    %c0_i32 = arith.constant 0 : i32
    %c0_i32_0 = arith.constant 0 : i32
    %c0_i32_1 = arith.constant 0 : i32
    return %c0_i32, %c0_i32_0 : i32, i32
  }
  func.func @transform_3(%arg0: i32) -> (i32, i32) {
    %c0_i32 = arith.constant 0 : i32
    %c0_i32_0 = arith.constant 0 : i32
    return %arg0, %c0_i32 : i32, i32
  }
}

</mosaic_0001>

<llo_original>
// kernel: _lambda_.14
$region0: #{_lambda_.14}
  #allocation0 [shape = 'u32[]', space=smem, size = 0x4, offset = 0x4, fixed_abs, tag = 'smem constant byte address 0x4 - core index']
  #allocation1 [shape = 'u32[72,128]{1,0:T(1,128)}', space=vmem, size = 0x9000, scoped, tag = 'internal scratch']
  %s0 = inlined_call_operand.vmem [shape: bf16[10,32], index: 0, kind: input, shape index: {}, may-alias: {0,2}]
  %s1 = inlined_call_operand.vmem [shape: bf16[10,32], index: 1, kind: input, shape index: {}]
  %s2 = inlined_call_operand.vmem [shape: bf16[10,32], index: 2, kind: output, shape index: {}, may-alias: {0,2}]
  %s3 = sld [smem:[#allocation0]]
  $region18: #{_lambda_.14} parent=0
    _
  %s5 = ssub.s32 1, %s3
  %s6 = scalar_select 0, %s5, %s3
  // Predicated region
  $region2: #{_lambda_.14} parent=0 // pred_check
    _
  $region3: #{_lambda_.14} parent=0 // pred_check_branch
    %8 = sbr.rel (0) target = $region5
  $region4: #{_lambda_.14} parent=0 // pred_region
    _
  $region5: #{_lambda_.14} parent=0 // pred_fallthru
    _
  // Predicated region
  $region6: #{_lambda_.14} parent=0 // pred_check
    _
  $region7: #{_lambda_.14} parent=0 // pred_check_branch
    %10 = sbr.rel (0) target = $region9
  $region8: #{_lambda_.14} parent=0 // pred_region
    _
  $region9: #{_lambda_.14} parent=0 // pred_fallthru
    _
  %v11 = vld [vmem:[%s0] sm:$0xf]
  %v12 = vld [vmem:[%s0 + $0x4] sm:$0x1]
  %v13 = vunpack.c.l.bf16 %v11
  %v14 = vunpack.c.l.bf16 %v12
  %v15 = vld [vmem:[%s1] sm:$0xf]
  %v16 = vld [vmem:[%s1 + $0x4] sm:$0x1]
  %v17 = vunpack.c.l.bf16 %v15
  %v18 = vunpack.c.l.bf16 %v16
  %v19 = vadd.f32 %v13, %v17
  %v20 = vadd.f32 %v14, %v18
  %v21 = vpack.c.bf16 %v19, %v19
  %v22 = vpack.c.bf16 %v20, %v20
  %vm23 = vcmask 257024
  %24 = vst.msk [vmem:[%s2] sm:$0xf] %vm23, %v21
  %vm25 = vcmask 253952
  %26 = vst.msk [vmem:[%s2 + $0x4] sm:$0x1] %vm25, %v22
  // Predicated region
  $region10: #{_lambda_.14} parent=0 // pred_check
    _
  $region11: #{_lambda_.14} parent=0 // pred_check_branch
    %28 = sbr.rel (0) target = $region13
  $region12: #{_lambda_.14} parent=0 // pred_region
    _
  $region13: #{_lambda_.14} parent=0 // pred_fallthru
    _
  // Predicated region
  $region14: #{_lambda_.14} parent=0 // pred_check
    _
  $region15: #{_lambda_.14} parent=0 // pred_check_branch
    %30 = sbr.rel (0) target = $region17
  $region16: #{_lambda_.14} parent=0 // pred_region
    _
  $region17: #{_lambda_.14} parent=0 // pred_fallthru
    _

// kernel: _lambda_.13
$region0: #{_lambda_.13}
  #allocation0 [shape = 'u32[]', space=smem, size = 0x4, offset = 0x4, fixed_abs, tag = 'smem constant byte address 0x4 - core index']
  #allocation1 [shape = 'u32[72,128]{1,0:T(1,128)}', space=vmem, size = 0x9000, scoped, tag = 'internal scratch']
  %s0 = inlined_call_operand.vmem [shape: bf16[8,192], index: 0, kind: input, shape index: {}]
  %s1 = inlined_call_operand.vmem [shape: bf16[192,32], index: 1, kind: input, shape index: {}]
  %s2 = inlined_call_operand.vmem [shape: f32[1,32], index: 2, kind: input, shape index: {}]
  %s3 = inlined_call_operand.vmem [shape: bf16[8,32], index: 3, kind: output, shape index: {}]
  %s4 = sld [smem:[#allocation0]]
  $region22: #{_lambda_.13} parent=0
    _
  %s6 = ssub.s32 1, %s4
  %s7 = scalar_select 0, %s6, %s4
  // Predicated region
  $region2: #{_lambda_.13} parent=0 // pred_check
    _
  $region3: #{_lambda_.13} parent=0 // pred_check_branch
    %9 = sbr.rel (0) target = $region5
  $region4: #{_lambda_.13} parent=0 // pred_region
    _
  $region5: #{_lambda_.13} parent=0 // pred_fallthru
    _
  // Predicated region
  $region6: #{_lambda_.13} parent=0 // pred_check
    _
  $region7: #{_lambda_.13} parent=0 // pred_check_branch
    %11 = sbr.rel (0) target = $region9
  $region8: #{_lambda_.13} parent=0 // pred_region
    _
  $region9: #{_lambda_.13} parent=0 // pred_fallthru
    _
  // Predicated region
  $region10: #{_lambda_.13} parent=0 // pred_check
    _
  $region11: #{_lambda_.13} parent=0 // pred_check_branch
    %13 = sbr.rel (0) target = $region13
  $region12: #{_lambda_.13} parent=0 // pred_region
    _
  $region13: #{_lambda_.13} parent=0 // pred_fallthru
    _
  %v15 = vld [vmem:[%s0] sm:$0xff]
  %v16 = vld [vmem:[%s1] sm:$0xf]
  %v17 = vld [vmem:[%s1 + $0x4] sm:$0xf]
  %v18 = vld [vmem:[%s1 + $0x8] sm:$0xf]
  %v19 = vld [vmem:[%s1 + $0xc] sm:$0xf]
  %v20 = vld [vmem:[%s1 + $0x10] sm:$0xf]
  %v21 = vld [vmem:[%s1 + $0x14] sm:$0xf]
  %v22 = vld [vmem:[%s1 + $0x18] sm:$0xf]
  %v23 = vld [vmem:[%s1 + $0x1c] sm:$0xf]
  %v24 = vld [vmem:[%s1 + $0x20] sm:$0xf]
  %v25 = vld [vmem:[%s1 + $0x24] sm:$0xf]
  %v26 = vld [vmem:[%s1 + $0x28] sm:$0xf]
  %v27 = vld [vmem:[%s1 + $0x2c] sm:$0xf]
  %v28 = vld [vmem:[%s1 + $0x30] sm:$0xf]
  %v29 = vld [vmem:[%s1 + $0x34] sm:$0xf]
  %v30 = vld [vmem:[%s1 + $0x38] sm:$0xf]
  %v31 = vld [vmem:[%s1 + $0x3c] sm:$0xf]
  %v32 = vld [vmem:[%s1 + $0x40] sm:$0xf]
  %v33 = vld [vmem:[%s1 + $0x44] sm:$0xf]
  %v34 = vld [vmem:[%s1 + $0x48] sm:$0xf]
  %v35 = vld [vmem:[%s1 + $0x4c] sm:$0xf]
  %v36 = vld [vmem:[%s1 + $0x50] sm:$0xf]
  %v37 = vld [vmem:[%s1 + $0x54] sm:$0xf]
  %v38 = vld [vmem:[%s1 + $0x58] sm:$0xf]
  %v39 = vld [vmem:[%s1 + $0x5c] sm:$0xf]
  %v40 = vld [vmem:[%s2] sm:$0x1]
  %v42 = vperm.slane %v40, 0
  %v45 = vunpack.c.l.b16 %v15
  %v46 = vunpack.c.h.b16 %v15
  %v47 = vpack.c.b16 %v45, %v45
  %v48 = vpack.c.b16 %v46, %v46
  %v74 = vunpack.c.l.b16 %v16
  %v75 = vunpack.c.l.b16 %v17
  %v76 = vunpack.c.l.b16 %v18
  %v77 = vunpack.c.l.b16 %v19
  %v78 = vunpack.c.l.b16 %v20
  %v79 = vunpack.c.l.b16 %v21
  %v80 = vunpack.c.l.b16 %v22
  %v81 = vunpack.c.l.b16 %v23
  %v82 = vunpack.c.l.b16 %v24
  %v83 = vunpack.c.l.b16 %v25
  %v84 = vunpack.c.l.b16 %v26
  %v85 = vunpack.c.l.b16 %v27
  %v86 = vunpack.c.l.b16 %v28
  %v87 = vunpack.c.l.b16 %v29
  %v88 = vunpack.c.l.b16 %v30
  %v89 = vunpack.c.l.b16 %v31
  %v90 = vunpack.c.l.b16 %v32
  %v91 = vunpack.c.l.b16 %v33
  %v92 = vunpack.c.l.b16 %v34
  %v93 = vunpack.c.l.b16 %v35
  %v94 = vunpack.c.l.b16 %v36
  %v95 = vunpack.c.l.b16 %v37
  %v96 = vunpack.c.l.b16 %v38
  %v97 = vunpack.c.l.b16 %v39
  %v98 = vpack.c.b16 %v75, %v74
  %v99 = vpack.c.b16 %v77, %v76
  %v100 = vpack.c.b16 %v79, %v78
  %v101 = vpack.c.b16 %v81, %v80
  %v102 = vpack.c.b16 %v83, %v82
  %v103 = vpack.c.b16 %v85, %v84
  %v104 = vpack.c.b16 %v87, %v86
  %v105 = vpack.c.b16 %v89, %v88
  %v106 = vpack.c.b16 %v91, %v90
  %v107 = vpack.c.b16 %v93, %v92
  %v108 = vpack.c.b16 %v95, %v94
  %v109 = vpack.c.b16 %v97, %v96
  %vm122 = vcmask 523264
  %v124 = vsel %vm122, %v48, 0
  %126 = vmatpush.bf16.msra.mxu0 %v105
  %127 = vmatpush.bf16.msra.mxu0 %v104
  %128 = vmatpush.bf16.msra.mxu0 %v103
  %129 = vmatpush.bf16.msra.mxu0 %v102
  %130 = vmatpush.bf16.msra.mxu0 %v101
  %131 = vmatpush.bf16.msra.mxu0 %v100
  %132 = vmatpush.bf16.msra.mxu0 %v99
  %133 = vmatpush.bf16.msra.mxu0 %v98
  %134 = vmatmul.bf16.gmra.mxu0 %v47
  %v135 = vpop.f32.mrf.mxu0
  %v136 = vadd.f32 %v42, %v135
  %v137 = vpop.f32.mrf.mxu0
  %138 = vdwg.mxu0
  %139 = vmatpush.bf16.msra.mxu0 0
  %140 = vmatpush.bf16.msra.mxu0 0
  %141 = vmatpush.bf16.msra.mxu0 0
  %142 = vmatpush.bf16.msra.mxu0 0
  %143 = vmatpush.bf16.msra.mxu0 %v109
  %144 = vmatpush.bf16.msra.mxu0 %v108
  %145 = vmatpush.bf16.msra.mxu0 %v107
  %146 = vmatpush.bf16.msra.mxu0 %v106
  %147 = vmatmul.bf16.gmra.mxu0 %v124
  %v148 = vpop.f32.mrf.mxu0
  %v149 = vadd.f32 %v136, %v148
  %v150 = vpop.f32.mrf.mxu0
  %151 = vdwg.mxu0
  %v152 = vpack.c.bf16 %v149, %v149
  %vm153 = vcmask 257024
  %154 = vst.msk [vmem:[%s3] sm:$0xf] %vm153, %v152
  // Predicated region
  $region14: #{_lambda_.13} parent=0 // pred_check
    _
  $region15: #{_lambda_.13} parent=0 // pred_check_branch
    %156 = sbr.rel (0) target = $region17
  $region16: #{_lambda_.13} parent=0 // pred_region
    _
  $region17: #{_lambda_.13} parent=0 // pred_fallthru
    _
  // Predicated region
  $region18: #{_lambda_.13} parent=0 // pred_check
    _
  $region19: #{_lambda_.13} parent=0 // pred_check_branch
    %158 = sbr.rel (0) target = $region21
  $region20: #{_lambda_.13} parent=0 // pred_region
    _
  $region21: #{_lambda_.13} parent=0 // pred_fallthru
    _

// kernel: _lambda_.16
$region0: #{_lambda_.16}
  #allocation0 [shape = 'u32[]', space=smem, size = 0x4, offset = 0x4, fixed_abs, tag = 'smem constant byte address 0x4 - core index']
  #allocation1 [shape = 'u32[72,128]{1,0:T(1,128)}', space=vmem, size = 0x9000, scoped, tag = 'internal scratch']
  %s0 = inlined_call_operand.vmem [shape: bf16[2,5,32], index: 0, kind: input, shape index: {}]
  %s1 = inlined_call_operand.vmem [shape: bf16[2,5,32], index: 1, kind: input, shape index: {}]
  %s2 = inlined_call_operand.vmem [shape: bf16[2,5,32], index: 2, kind: input, shape index: {}]
  %s3 = inlined_call_operand.vmem [shape: bf16[2,5,32], index: 3, kind: output, shape index: {}]
  %s4 = sld [smem:[#allocation0]]
  $region45: #{_lambda_.16} parent=0
    _
  %s6 = ssub.s32 1, %s4
  %s7 = scalar_select 0, %s6, %s4
  loop: start=0, step=1, limit=4
  $region2: #{_lambda_.16} parent=0 // loop_pre_header
    _
  $region3: #{_lambda_.16} parent=0 // loop_header
    %s9 = sphi 0, %s13
    %p10 = scmp.ge.s32.totalorder %s9, 4
    %s19 = sphi 0, %s21
    %s22 = sphi 0, %s19
    %s23 = sphi 0, %s22
    %s39 = sphi 0, %s23
    %s45 = sphi 0, %s47
    %s48 = sphi 0, %s45
    %s49 = sphi 0, %s48
    %s65 = sphi 0, %s49
    %s71 = sphi 0, %s73
    %s74 = sphi 0, %s71
    %s75 = sphi 0, %s74
    %s91 = sphi 0, %s75
    %s97 = sphi 0, %s99
    %s100 = sphi 0, %s97
    %s101 = sphi 0, %s100
    %s117 = sphi 0, %s101
  $region4: #{_lambda_.16} parent=0 // loop_header_branch
    %12 = sbr.rel (%p10) target = $region8
  $region5: #{_lambda_.16} parent=0 // loop_body
    %s14 = ssub.s32 %s9, 1
    %s15 = ssub.s32 %s9, 2
    %s16 = sadd.s32 %s9, 1
    %s17 = ssub.s32 %s9, %s16
    %p18 = scmp.eq.s32.totalorder %s17, 0
    %s20 = sadd.s32 %s19, 1
    %s21 = scalar_select %p18, %s19, %s20
    %p24 = pneg %p18
    %p25 = scmp.eq.s32.totalorder %s9, 1
    %p26 = por %p24, %p25
    %p27 = scmp.ne.s32.totalorder %s19, %s22
    %p28 = scmp.eq.s32.totalorder %s9, 0
    %p29 = por %p27, %p28
    %p30 = scmp.ne.s32.totalorder %s19, %s22
    %p31 = scmp.eq.s32.totalorder %s14, 1
    %p32 = por %p30, %p31
    %p33 = scmp.ne.s32.totalorder %s22, %s23
    %p34 = scmp.eq.s32.totalorder %s14, 0
    %p35 = por %p33, %p34
    %p36 = scmp.ne.s32.totalorder %s22, %s23
    %p37 = scmp.eq.s32.totalorder %s15, 1
    %p38 = por %p36, %p37
    %p40 = scmp.ne.s32.totalorder %s23, %s39
    %p41 = scmp.eq.s32.totalorder %s15, 0
    %p42 = por %p40, %p41
    %s43 = ssub.s32 %s9, %s16
    %p44 = scmp.eq.s32.totalorder %s43, 0
    %s46 = sadd.s32 %s45, 1
    %s47 = scalar_select %p44, %s45, %s46
    %p50 = pneg %p44
    %p51 = scmp.eq.s32.totalorder %s9, 1
    %p52 = por %p50, %p51
    %p53 = scmp.ne.s32.totalorder %s45, %s48
    %p54 = scmp.eq.s32.totalorder %s9, 0
    %p55 = por %p53, %p54
    %p56 = scmp.ne.s32.totalorder %s45, %s48
    %p57 = scmp.eq.s32.totalorder %s14, 1
    %p58 = por %p56, %p57
    %p59 = scmp.ne.s32.totalorder %s48, %s49
    %p60 = scmp.eq.s32.totalorder %s14, 0
    %p61 = por %p59, %p60
    %p62 = scmp.ne.s32.totalorder %s48, %s49
    %p63 = scmp.eq.s32.totalorder %s15, 1
    %p64 = por %p62, %p63
    %p66 = scmp.ne.s32.totalorder %s49, %s65
    %p67 = scmp.eq.s32.totalorder %s15, 0
    %p68 = por %p66, %p67
    %s69 = ssub.s32 %s9, %s16
    %p70 = scmp.eq.s32.totalorder %s69, 0
    %s72 = sadd.s32 %s71, 1
    %s73 = scalar_select %p70, %s71, %s72
    %p76 = pneg %p70
    %p77 = scmp.eq.s32.totalorder %s9, 1
    %p78 = por %p76, %p77
    %p79 = scmp.ne.s32.totalorder %s71, %s74
    %p80 = scmp.eq.s32.totalorder %s9, 0
    %p81 = por %p79, %p80
    %p82 = scmp.ne.s32.totalorder %s71, %s74
    %p83 = scmp.eq.s32.totalorder %s14, 1
    %p84 = por %p82, %p83
    %p85 = scmp.ne.s32.totalorder %s74, %s75
    %p86 = scmp.eq.s32.totalorder %s14, 0
    %p87 = por %p85, %p86
    %p88 = scmp.ne.s32.totalorder %s74, %s75
    %p89 = scmp.eq.s32.totalorder %s15, 1
    %p90 = por %p88, %p89
    %p92 = scmp.ne.s32.totalorder %s75, %s91
    %p93 = scmp.eq.s32.totalorder %s15, 0
    %p94 = por %p92, %p93
    %s95 = ssub.s32 %s9, %s16
    %p96 = scmp.eq.s32.totalorder %s95, 0
    %s98 = sadd.s32 %s97, 1
    %s99 = scalar_select %p96, %s97, %s98
    %p102 = pneg %p96
    %p103 = scmp.eq.s32.totalorder %s9, 1
    %p104 = por %p102, %p103
    %p105 = scmp.ne.s32.totalorder %s97, %s100
    %p106 = scmp.eq.s32.totalorder %s9, 0
    %p107 = por %p105, %p106
    %p108 = scmp.ne.s32.totalorder %s97, %s100
    %p109 = scmp.eq.s32.totalorder %s14, 1
    %p110 = por %p108, %p109
    %p111 = scmp.ne.s32.totalorder %s100, %s101
    %p112 = scmp.eq.s32.totalorder %s14, 0
    %p113 = por %p111, %p112
    %p114 = scmp.ne.s32.totalorder %s100, %s101
    %p115 = scmp.eq.s32.totalorder %s15, 1
    %p116 = por %p114, %p115
    %p118 = scmp.ne.s32.totalorder %s101, %s117
    %p119 = scmp.eq.s32.totalorder %s15, 0
    %p120 = por %p118, %p119
    %p121 = scmp.le.s32.totalorder 1, %s9
    %p122 = scmp.lt.s32.totalorder %s9, 3
    %p123 = pnand %p121, %p122
    %p124 = pneg %p123
    // Predicated region
    $region9: #{_lambda_.16} parent=5 // pred_check
      _
    $region10: #{_lambda_.16} parent=5 // pred_check_branch
      %126 = sbr.rel (%p123) target = $region12
    $region11: #{_lambda_.16} parent=5 // pred_region
      %s127 = ssub.s32 %s9, 1
    $region12: #{_lambda_.16} parent=5 // pred_fallthru
      _
    %p128 = scmp.lt.s32.totalorder %s9, 2
    // Predicated region
    $region13: #{_lambda_.16} parent=5 // pred_check
      %p129 = pneg %p128
    $region14: #{_lambda_.16} parent=5 // pred_check_branch
      %131 = sbr.rel (%p129) target = $region16
    $region15: #{_lambda_.16} parent=5 // pred_region
      // Predicated region
      $region17: #{_lambda_.16} parent=15 // pred_check
        %p132 = pneg %p29
      $region18: #{_lambda_.16} parent=15 // pred_check_branch
        %134 = sbr.rel (%p132) target = $region20
      $region19: #{_lambda_.16} parent=15 // pred_region
        %p135 = scmp.lt.s32.totalorder %s9, 1
        %s136 = scalar_select %p135, %s9, 1
        %s137 = smul.addr %s136, 4
        %s138 = scalar_lea.vmem %s0, %s137
      $region20: #{_lambda_.16} parent=15 // pred_fallthru
        _
      // Predicated region
      $region21: #{_lambda_.16} parent=15 // pred_check
        %p139 = pneg %p55
      $region22: #{_lambda_.16} parent=15 // pred_check_branch
        %141 = sbr.rel (%p139) target = $region24
      $region23: #{_lambda_.16} parent=15 // pred_region
        %p142 = scmp.lt.s32.totalorder %s9, 1
        %s143 = scalar_select %p142, %s9, 1
        %s144 = smul.addr %s143, 4
        %s145 = scalar_lea.vmem %s1, %s144
      $region24: #{_lambda_.16} parent=15 // pred_fallthru
        _
      // Predicated region
      $region25: #{_lambda_.16} parent=15 // pred_check
        %p146 = pneg %p81
      $region26: #{_lambda_.16} parent=15 // pred_check_branch
        %148 = sbr.rel (%p146) target = $region28
      $region27: #{_lambda_.16} parent=15 // pred_region
        %p149 = scmp.lt.s32.totalorder %s9, 1
        %s150 = scalar_select %p149, %s9, 1
        %s151 = smul.addr %s150, 4
        %s152 = scalar_lea.vmem %s2, %s151
      $region28: #{_lambda_.16} parent=15 // pred_fallthru
        _
    $region16: #{_lambda_.16} parent=5 // pred_fallthru
      _
    %p153 = scmp.le.s32.totalorder 1, %s9
    %p154 = scmp.lt.s32.totalorder %s9, 3
    %p155 = pnand %p153, %p154
    %p156 = pneg %p155
    // Predicated region
    $region29: #{_lambda_.16} parent=5 // pred_check
      _
    $region30: #{_lambda_.16} parent=5 // pred_check_branch
      %158 = sbr.rel (%p155) target = $region32
    $region31: #{_lambda_.16} parent=5 // pred_region
      %s159 = ssub.s32 %s9, 1
      %p160 = scmp.lt.s32.totalorder %s14, 1
      %s161 = scalar_select %p160, %s14, 1
      %s162 = smul.addr %s161, 4
      %s163 = scalar_lea.vmem %s0, %s162
      %p164 = pneg %p35
      %p165 = pneg %p32
      %p166 = scmp.lt.s32.totalorder %s14, 1
      %s167 = scalar_select %p166, %s14, 1
      %s168 = smul.addr %s167, 4
      %s169 = scalar_lea.vmem %s1, %s168
      %p170 = pneg %p61
      %p171 = pneg %p58
      %p172 = scmp.lt.s32.totalorder %s14, 1
      %s173 = scalar_select %p172, %s14, 1
      %s174 = smul.addr %s173, 4
      %s175 = scalar_lea.vmem %s2, %s174
      %p176 = pneg %p87
      %p177 = pneg %p84
      %p178 = pneg %p113
      %p179 = pneg %p110
      %p180 = scmp.lt.s32.totalorder %s14, 1
      %s181 = scalar_select %p180, %s14, 1
      %s182 = smul.addr %s181, 4
      %s183 = scalar_lea.vmem %s3, %s182
      %p184 = scmp.lt.s32.totalorder %s14, 1
      %s185 = scalar_select %p184, %s14, 1
      %s186 = smul.addr %s185, 4
      %s187 = scalar_lea.vmem %s0, %s186
      %p188 = scmp.lt.s32.totalorder %s14, 1
      %s189 = scalar_select %p188, %s14, 1
      %s190 = smul.addr %s189, 4
      %s191 = scalar_lea.vmem %s1, %s190
      %p192 = scmp.lt.s32.totalorder %s14, 1
      %s193 = scalar_select %p192, %s14, 1
      %s194 = smul.addr %s193, 4
      %s195 = scalar_lea.vmem %s2, %s194
      %p196 = scmp.lt.s32.totalorder %s14, 1
      %s197 = scalar_select %p196, %s14, 1
      %s198 = smul.addr %s197, 4
      %s199 = scalar_lea.vmem %s3, %s198
      %v201 = vld [vmem:[%s187] sm:$0x7]
      %v202 = vld [vmem:[%s191] sm:$0x7]
      %v203 = vld [vmem:[%s195] sm:$0x7]
      %vm204 = vcmask 64512
      %v206 = vsel %vm204, %v201, 0
      %v209 = vsel %vm204, %v202, 0
      %211 = vmatpush.bf16.xpose.msra.mxu0 0
      %212 = vmatpush.bf16.xpose.msra.mxu0 0
      %213 = vmatpush.bf16.xpose.msra.mxu0 0
      %214 = vmatpush.bf16.xpose.msra.mxu0 0
      %215 = vmatpush.bf16.xpose.msra.mxu0 0
      %216 = vmatpush.bf16.xpose.msra.mxu0 0
      %217 = vmatpush.bf16.xpose.msra.mxu0 0
      %218 = vmatpush.bf16.xpose.msra.mxu0 %v209
      %219 = vmatmul.bf16.gmra.mxu0 %v206
      %v220 = vpop.f32.mrf.mxu0
      %v221 = vadd.f32 0.0, %v220
      %v222 = vpop.f32.mrf.mxu0
      %223 = vdwg.mxu0
      %v224 = vmul.f32 %v221, 0.35355338
      %vm225 = vcmask 36864
      %v226 = vsel %vm225, %v224, -inf
      %227 = vmax.xlane.f32.xlu0 %v226
      %v228 = vpop.xlane.xlu0 %227
      %v229 = vsub.f32 %v224, %v228
      %v230 = vmul.f32 %v229, 1.442695
      %v231 = vpow.pop %v230
      %v232 = vsel %vm225, %v231, 0.0
      %233 = vadd.xlane.f32.xlu0 %v232
      %v234 = vpop.xlane.xlu0 %233
      %v235 = vrcp.pop %v234
      %v236 = vmul.f32 %v231, %v235
      %v237 = vpack.c.bf16 %v236, %v236
      %vm238 = vcmask 39936
      %v240 = vsel %vm238, %v237, 0
      %vm242 = vcmask 1041408
      %vm243 = vcmask 1042432
      %v244 = vsel %vm242, 4294967295, 65535
      %v245 = vsel %vm243, %v244, 0
      %v247 = vand.u32 %v203, %v245
      %249 = vmatpush.bf16.msra.mxu0 0
      %250 = vmatpush.bf16.msra.mxu0 0
      %251 = vmatpush.bf16.msra.mxu0 0
      %252 = vmatpush.bf16.msra.mxu0 0
      %253 = vmatpush.bf16.msra.mxu0 0
      %254 = vmatpush.bf16.msra.mxu0 0
      %255 = vmatpush.bf16.msra.mxu0 0
      %256 = vmatpush.bf16.msra.mxu0 %v247
      %257 = vmatmul.bf16.gmra.mxu0 %v240
      %v258 = vpop.f32.mrf.mxu0
      %v259 = vadd.f32 0.0, %v258
      %v260 = vpop.f32.mrf.mxu0
      %261 = vdwg.mxu0
      %v262 = vpack.c.bf16 %v259, %v259
      %vm263 = vcmask 59392
      %vm264 = vsmask.f32 2304
      %vm265 = vmand %vm263, %vm264
      %v266 = vld [vmem:[%s199] sm:$0x7]
      %v267 = vsel %vm265, %v262, %v266
      %268 = vst [vmem:[%s199] sm:$0x7] %v267
      %v270 = vunpack.c.l.b16 %v201
      %v271 = vpack.c.b16 %v270, %v270
      %272 = vrot.lane.b32.xlu0 %v271, 120
      %v273 = vpop.permute.xlu0 %272
      %v275 = vunpack.c.l.b16 %v202
      %v276 = vpack.c.b16 %v275, %v275
      %277 = vrot.lane.b32.xlu0 %v276, 120
      %v278 = vpop.permute.xlu0 %277
      %v280 = vsel %vm204, %v273, 0
      %v283 = vsel %vm204, %v278, 0
      %285 = vmatpush.bf16.xpose.msra.mxu0 0
      %286 = vmatpush.bf16.xpose.msra.mxu0 0
      %287 = vmatpush.bf16.xpose.msra.mxu0 0
      %288 = vmatpush.bf16.xpose.msra.mxu0 0
      %289 = vmatpush.bf16.xpose.msra.mxu0 0
      %290 = vmatpush.bf16.xpose.msra.mxu0 0
      %291 = vmatpush.bf16.xpose.msra.mxu0 0
      %292 = vmatpush.bf16.xpose.msra.mxu0 %v283
      %293 = vmatmul.bf16.gmra.mxu0 %v280
      %v294 = vpop.f32.mrf.mxu0
      %v295 = vadd.f32 0.0, %v294
      %v296 = vpop.f32.mrf.mxu0
      %297 = vdwg.mxu0
      %v298 = vmul.f32 %v295, 0.35355338
      %v299 = vsel %vm225, %v298, -inf
      %300 = vmax.xlane.f32.xlu0 %v299
      %v301 = vpop.xlane.xlu0 %300
      %v302 = vsub.f32 %v298, %v301
      %v303 = vmul.f32 %v302, 1.442695
      %v304 = vpow.pop %v303
      %v305 = vsel %vm225, %v304, 0.0
      %306 = vadd.xlane.f32.xlu0 %v305
      %v307 = vpop.xlane.xlu0 %306
      %v308 = vrcp.pop %v307
      %v309 = vmul.f32 %v304, %v308
      %v310 = vpack.c.bf16 %v309, %v309
      %v312 = vunpack.c.l.b16 %v203
      %v313 = vpack.c.b16 %v312, %v312
      %314 = vrot.lane.b32.xlu0 %v313, 120
      %v315 = vpop.permute.xlu0 %314
      %v317 = vsel %vm238, %v310, 0
      %v320 = vand.u32 %v315, %v245
      %322 = vmatpush.bf16.msra.mxu0 0
      %323 = vmatpush.bf16.msra.mxu0 0
      %324 = vmatpush.bf16.msra.mxu0 0
      %325 = vmatpush.bf16.msra.mxu0 0
      %326 = vmatpush.bf16.msra.mxu0 0
      %327 = vmatpush.bf16.msra.mxu0 0
      %328 = vmatpush.bf16.msra.mxu0 0
      %329 = vmatpush.bf16.msra.mxu0 %v320
      %330 = vmatmul.bf16.gmra.mxu0 %v317
      %v331 = vpop.f32.mrf.mxu0
      %v332 = vadd.f32 0.0, %v331
      %v333 = vpop.f32.mrf.mxu0
      %334 = vdwg.mxu0
      %v335 = vpack.c.bf16 %v332, %v332
      %337 = vrot.lane.b32.xlu0 %v335, 8
      %v338 = vpop.permute.xlu0 %337
      %vm340 = vcmask 124992
      %vm341 = vmand %vm340, %vm264
      %v342 = vld [vmem:[%s199] sm:$0x7]
      %v343 = vsel %vm341, %v338, %v342
      %344 = vst [vmem:[%s199] sm:$0x7] %v343
      %345 = vrot.lane.b32.xlu0 %v271, 112
      %v346 = vpop.permute.xlu0 %345
      %347 = vrot.lane.b32.xlu0 %v276, 112
      %v348 = vpop.permute.xlu0 %347
      %v350 = vsel %vm204, %v346, 0
      %v353 = vsel %vm204, %v348, 0
      %355 = vmatpush.bf16.xpose.msra.mxu0 0
      %356 = vmatpush.bf16.xpose.msra.mxu0 0
      %357 = vmatpush.bf16.xpose.msra.mxu0 0
      %358 = vmatpush.bf16.xpose.msra.mxu0 0
      %359 = vmatpush.bf16.xpose.msra.mxu0 0
      %360 = vmatpush.bf16.xpose.msra.mxu0 0
      %361 = vmatpush.bf16.xpose.msra.mxu0 0
      %362 = vmatpush.bf16.xpose.msra.mxu0 %v353
      %363 = vmatmul.bf16.gmra.mxu0 %v350
      %v364 = vpop.f32.mrf.mxu0
      %v365 = vadd.f32 0.0, %v364
      %v366 = vpop.f32.mrf.mxu0
      %367 = vdwg.mxu0
      %v368 = vmul.f32 %v365, 0.35355338
      %v369 = vsel %vm225, %v368, -inf
      %370 = vmax.xlane.f32.xlu0 %v369
      %v371 = vpop.xlane.xlu0 %370
      %v372 = vsub.f32 %v368, %v371
      %v373 = vmul.f32 %v372, 1.442695
      %v374 = vpow.pop %v373
      %v375 = vsel %vm225, %v374, 0.0
      %376 = vadd.xlane.f32.xlu0 %v375
      %v377 = vpop.xlane.xlu0 %376
      %v378 = vrcp.pop %v377
      %v379 = vmul.f32 %v374, %v378
      %v380 = vpack.c.bf16 %v379, %v379
      %381 = vrot.lane.b32.xlu0 %v313, 112
      %v382 = vpop.permute.xlu0 %381
      %v384 = vsel %vm238, %v380, 0
      %v387 = vand.u32 %v382, %v245
      %389 = vmatpush.bf16.msra.mxu0 0
      %390 = vmatpush.bf16.msra.mxu0 0
      %391 = vmatpush.bf16.msra.mxu0 0
      %392 = vmatpush.bf16.msra.mxu0 0
      %393 = vmatpush.bf16.msra.mxu0 0
      %394 = vmatpush.bf16.msra.mxu0 0
      %395 = vmatpush.bf16.msra.mxu0 0
      %396 = vmatpush.bf16.msra.mxu0 %v387
      %397 = vmatmul.bf16.gmra.mxu0 %v384
      %v398 = vpop.f32.mrf.mxu0
      %v399 = vadd.f32 0.0, %v398
      %v400 = vpop.f32.mrf.mxu0
      %401 = vdwg.mxu0
      %v402 = vpack.c.bf16 %v399, %v399
      %404 = vrot.lane.b32.xlu0 %v402, 16
      %v405 = vpop.permute.xlu0 %404
      %vm407 = vcmask 190592
      %vm408 = vmand %vm407, %vm264
      %v409 = vld [vmem:[%s199] sm:$0x7]
      %v410 = vsel %vm408, %v405, %v409
      %411 = vst [vmem:[%s199] sm:$0x7] %v410
      %412 = vrot.lane.b32.xlu0 %v271, 104
      %v413 = vpop.permute.xlu0 %412
      %414 = vrot.lane.b32.xlu0 %v276, 104
      %v415 = vpop.permute.xlu0 %414
      %v417 = vsel %vm204, %v413, 0
      %v420 = vsel %vm204, %v415, 0
      %422 = vmatpush.bf16.xpose.msra.mxu0 0
      %423 = vmatpush.bf16.xpose.msra.mxu0 0
      %424 = vmatpush.bf16.xpose.msra.mxu0 0
      %425 = vmatpush.bf16.xpose.msra.mxu0 0
      %426 = vmatpush.bf16.xpose.msra.mxu0 0
      %427 = vmatpush.bf16.xpose.msra.mxu0 0
      %428 = vmatpush.bf16.xpose.msra.mxu0 0
      %429 = vmatpush.bf16.xpose.msra.mxu0 %v420
      %430 = vmatmul.bf16.gmra.mxu0 %v417
      %v431 = vpop.f32.mrf.mxu0
      %v432 = vadd.f32 0.0, %v431
      %v433 = vpop.f32.mrf.mxu0
      %434 = vdwg.mxu0
      %v435 = vmul.f32 %v432, 0.35355338
      %v436 = vsel %vm225, %v435, -inf
      %437 = vmax.xlane.f32.xlu0 %v436
      %v438 = vpop.xlane.xlu0 %437
      %v439 = vsub.f32 %v435, %v438
      %v440 = vmul.f32 %v439, 1.442695
      %v441 = vpow.pop %v440
      %v442 = vsel %vm225, %v441, 0.0
      %443 = vadd.xlane.f32.xlu0 %v442
      %v444 = vpop.xlane.xlu0 %443
      %v445 = vrcp.pop %v444
      %v446 = vmul.f32 %v441, %v445
      %v447 = vpack.c.bf16 %v446, %v446
      %448 = vrot.lane.b32.xlu0 %v313, 104
      %v449 = vpop.permute.xlu0 %448
      %v451 = vsel %vm238, %v447, 0
      %v454 = vand.u32 %v449, %v245
      %456 = vmatpush.bf16.msra.mxu0 0
      %457 = vmatpush.bf16.msra.mxu0 0
      %458 = vmatpush.bf16.msra.mxu0 0
      %459 = vmatpush.bf16.msra.mxu0 0
      %460 = vmatpush.bf16.msra.mxu0 0
      %461 = vmatpush.bf16.msra.mxu0 0
      %462 = vmatpush.bf16.msra.mxu0 0
      %463 = vmatpush.bf16.msra.mxu0 %v454
      %464 = vmatmul.bf16.gmra.mxu0 %v451
      %v465 = vpop.f32.mrf.mxu0
      %v466 = vadd.f32 0.0, %v465
      %v467 = vpop.f32.mrf.mxu0
      %468 = vdwg.mxu0
      %v469 = vpack.c.bf16 %v466, %v466
      %471 = vrot.lane.b32.xlu0 %v469, 24
      %v472 = vpop.permute.xlu0 %471
      %vm474 = vcmask 256192
      %vm475 = vmand %vm474, %vm264
      %v476 = vld [vmem:[%s199] sm:$0x7]
      %v477 = vsel %vm475, %v472, %v476
      %478 = vst [vmem:[%s199] sm:$0x7] %v477
      %p479 = scmp.lt.s32.totalorder %s14, 1
      %s480 = scalar_select %p479, %s14, 1
      %s481 = smul.addr %s480, 4
      %s482 = scalar_lea.vmem %s3, %s481
      // Predicated region
      $region33: #{_lambda_.16} parent=31 // pred_check
        %p483 = pneg %p110
      $region34: #{_lambda_.16} parent=31 // pred_check_branch
        %485 = sbr.rel (%p483) target = $region36
      $region35: #{_lambda_.16} parent=31 // pred_region
        _
      $region36: #{_lambda_.16} parent=31 // pred_fallthru
        _
    $region32: #{_lambda_.16} parent=5 // pred_fallthru
      _
    %p486 = scmp.le.s32.totalorder 2, %s9
    // Predicated region
    $region37: #{_lambda_.16} parent=5 // pred_check
      %p487 = pneg %p486
    $region38: #{_lambda_.16} parent=5 // pred_check_branch
      %489 = sbr.rel (%p487) target = $region40
    $region39: #{_lambda_.16} parent=5 // pred_region
      %s490 = ssub.s32 %s9, 2
      // Predicated region
      $region41: #{_lambda_.16} parent=39 // pred_check
        %p491 = pneg %p116
      $region42: #{_lambda_.16} parent=39 // pred_check_branch
        %493 = sbr.rel (%p491) target = $region44
      $region43: #{_lambda_.16} parent=39 // pred_region
        %p494 = scmp.lt.s32.totalorder %s15, 1
        %s495 = scalar_select %p494, %s15, 1
        %s496 = smul.addr %s495, 4
        %s497 = scalar_lea.vmem %s3, %s496
      $region44: #{_lambda_.16} parent=39 // pred_fallthru
        _
    $region40: #{_lambda_.16} parent=5 // pred_fallthru
      _
  $region6: #{_lambda_.16} parent=0 // loop_footer
    %s13 = sadd.s32 1, %s9
  $region7: #{_lambda_.16} parent=0 // loop_footer_branch
    %8 = sbr.rel target = $region3
  $region8: #{_lambda_.16} parent=0 // loop_exit
    _

// kernel: _lambda_.15
$region0: #{_lambda_.15}
  #allocation0 [shape = 'u32[]', space=smem, size = 0x4, offset = 0x4, fixed_abs, tag = 'smem constant byte address 0x4 - core index']
  #allocation1 [shape = 'u32[72,128]{1,0:T(1,128)}', space=vmem, size = 0x9000, scoped, tag = 'internal scratch']
  %s0 = inlined_call_operand.vmem [shape: bf16[10,32], index: 0, kind: input, shape index: {}]
  %s1 = inlined_call_operand.vmem [shape: f32[1,32], index: 1, kind: input, shape index: {}]
  %s2 = inlined_call_operand.vmem [shape: f32[1,32], index: 2, kind: input, shape index: {}, may-alias: {2,6,7,8}]
  %s3 = inlined_call_operand.vmem [shape: bf16[32,32], index: 3, kind: input, shape index: {}]
  %s4 = inlined_call_operand.vmem [shape: bf16[32,32], index: 4, kind: input, shape index: {}]
  %s5 = inlined_call_operand.vmem [shape: bf16[32,32], index: 5, kind: input, shape index: {}]
  %s6 = inlined_call_operand.vmem [shape: f32[1,32], index: 6, kind: input, shape index: {}, may-alias: {2,6,7,8}]
  %s7 = inlined_call_operand.vmem [shape: f32[1,32], index: 7, kind: input, shape index: {}, may-alias: {2,6,7,8}]
  %s8 = inlined_call_operand.vmem [shape: f32[1,32], index: 8, kind: input, shape index: {}, may-alias: {2,6,7,8}]
  %s9 = inlined_call_operand.vmem [shape: bf16[10,32], index: 9, kind: output, shape index: {0}]
  %s10 = inlined_call_operand.vmem [shape: bf16[10,32], index: 10, kind: output, shape index: {1}]
  %s11 = inlined_call_operand.vmem [shape: bf16[10,32], index: 11, kind: output, shape index: {2}]
  %12 = xla_tuple %s9, %s10, %s11
  %s13 = sld [smem:[#allocation0]]
  $region62: #{_lambda_.15} parent=0
    _
  %s15 = ssub.s32 1, %s13
  %s16 = scalar_select 0, %s15, %s13
  // Predicated region
  $region2: #{_lambda_.15} parent=0 // pred_check
    _
  $region3: #{_lambda_.15} parent=0 // pred_check_branch
    %18 = sbr.rel (0) target = $region5
  $region4: #{_lambda_.15} parent=0 // pred_region
    _
  $region5: #{_lambda_.15} parent=0 // pred_fallthru
    _
  // Predicated region
  $region6: #{_lambda_.15} parent=0 // pred_check
    _
  $region7: #{_lambda_.15} parent=0 // pred_check_branch
    %20 = sbr.rel (0) target = $region9
  $region8: #{_lambda_.15} parent=0 // pred_region
    _
  $region9: #{_lambda_.15} parent=0 // pred_fallthru
    _
  // Predicated region
  $region10: #{_lambda_.15} parent=0 // pred_check
    _
  $region11: #{_lambda_.15} parent=0 // pred_check_branch
    %22 = sbr.rel (0) target = $region13
  $region12: #{_lambda_.15} parent=0 // pred_region
    _
  $region13: #{_lambda_.15} parent=0 // pred_fallthru
    _
  // Predicated region
  $region14: #{_lambda_.15} parent=0 // pred_check
    _
  $region15: #{_lambda_.15} parent=0 // pred_check_branch
    %24 = sbr.rel (0) target = $region17
  $region16: #{_lambda_.15} parent=0 // pred_region
    _
  $region17: #{_lambda_.15} parent=0 // pred_fallthru
    _
  // Predicated region
  $region18: #{_lambda_.15} parent=0 // pred_check
    _
  $region19: #{_lambda_.15} parent=0 // pred_check_branch
    %26 = sbr.rel (0) target = $region21
  $region20: #{_lambda_.15} parent=0 // pred_region
    _
  $region21: #{_lambda_.15} parent=0 // pred_fallthru
    _
  // Predicated region
  $region22: #{_lambda_.15} parent=0 // pred_check
    _
  $region23: #{_lambda_.15} parent=0 // pred_check_branch
    %28 = sbr.rel (0) target = $region25
  $region24: #{_lambda_.15} parent=0 // pred_region
    _
  $region25: #{_lambda_.15} parent=0 // pred_fallthru
    _
  // Predicated region
  $region26: #{_lambda_.15} parent=0 // pred_check
    _
  $region27: #{_lambda_.15} parent=0 // pred_check_branch
    %30 = sbr.rel (0) target = $region29
  $region28: #{_lambda_.15} parent=0 // pred_region
    _
  $region29: #{_lambda_.15} parent=0 // pred_fallthru
    _
  // Predicated region
  $region30: #{_lambda_.15} parent=0 // pred_check
    _
  $region31: #{_lambda_.15} parent=0 // pred_check_branch
    %32 = sbr.rel (0) target = $region33
  $region32: #{_lambda_.15} parent=0 // pred_region
    _
  $region33: #{_lambda_.15} parent=0 // pred_fallthru
    _
  // Predicated region
  $region34: #{_lambda_.15} parent=0 // pred_check
    _
  $region35: #{_lambda_.15} parent=0 // pred_check_branch
    %34 = sbr.rel (0) target = $region37
  $region36: #{_lambda_.15} parent=0 // pred_region
    _
  $region37: #{_lambda_.15} parent=0 // pred_fallthru
    _
  %v36 = vld [vmem:[%s0] sm:$0xf]
  %v37 = vld [vmem:[%s0 + $0x4] sm:$0x1]
  %v38 = vld [vmem:[%s1] sm:$0x1]
  %v39 = vld [vmem:[%s2] sm:$0x1]
  %v40 = vunpack.c.l.bf16 %v36
  %v41 = vunpack.c.l.bf16 %v37
  %vm42 = vcmask 261120
  %v43 = vsel %vm42, %v40, 0.0
  %44 = vadd.xlane.f32.xlu0 %v43
  %v45 = vpop.xlane.xlu0 %44
  %vm46 = vcmask 254976
  %v47 = vsel %vm46, %v41, 0.0
  %48 = vadd.xlane.f32.xlu0 %v47
  %v49 = vpop.xlane.xlu0 %48
  %v50 = vrcp.pop 32.0
  %v51 = vmul.f32 32.0, %v50
  %v52 = vsub.f32 1.0, %v51
  %v53 = vmul.f32 %v50, %v52
  %v54 = vadd.f32 %v50, %v53
  %vm55 = vweird.f32 %v50
  %v56 = vsel %vm55, %v50, %v54
  %v57 = vmul.f32 %v45, %v56
  %v58 = vmul.f32 %v49, %v56
  %v59 = vsub.f32 %v40, %v57
  %v60 = vsub.f32 %v41, %v58
  %v61 = vmul.f32 %v59, %v59
  %v62 = vmul.f32 %v60, %v60
  %v63 = vsel %vm42, %v61, 0.0
  %64 = vadd.xlane.f32.xlu0 %v63
  %v65 = vpop.xlane.xlu0 %64
  %v66 = vsel %vm46, %v62, 0.0
  %67 = vadd.xlane.f32.xlu0 %v66
  %v68 = vpop.xlane.xlu0 %67
  %v69 = vmul.f32 %v65, %v56
  %v70 = vmul.f32 %v68, %v56
  %v71 = vadd.f32 %v69, 1e-06
  %v72 = vadd.f32 %v70, 1e-06
  %v73 = vrsqrt.pop %v71
  %v74 = vmul.f32 %v73, %v71
  %v75 = vmul.f32 %v74, %v73
  %v76 = vmul.f32 0.5, %v75
  %v77 = vsub.f32 1.5, %v76
  %v78 = vmul.f32 %v73, %v77
  %vm79 = vweird.f32 %v71
  %vm80 = vweird.f32 %v73
  %vm81 = vmor %vm79, %vm80
  %v82 = vsel %vm81, %v73, %v78
  %v83 = vrsqrt.pop %v72
  %v84 = vmul.f32 %v83, %v72
  %v85 = vmul.f32 %v84, %v83
  %v86 = vmul.f32 0.5, %v85
  %v87 = vsub.f32 1.5, %v86
  %v88 = vmul.f32 %v83, %v87
  %vm89 = vweird.f32 %v72
  %vm90 = vweird.f32 %v83
  %vm91 = vmor %vm89, %vm90
  %v92 = vsel %vm91, %v83, %v88
  %v93 = vmul.f32 %v59, %v82
  %v94 = vmul.f32 %v60, %v92
  %v96 = vperm.slane %v38, 0
  %v98 = vmul.f32 %v93, %v96
  %v99 = vmul.f32 %v94, %v96
  %v101 = vperm.slane %v39, 0
  %v103 = vadd.f32 %v98, %v101
  %v104 = vadd.f32 %v99, %v101
  %v105 = vpack.c.bf16 %v104, %v103
  %v106 = vld [vmem:[%s3] sm:$0xf]
  %v107 = vld [vmem:[%s3 + $0x4] sm:$0xf]
  %v108 = vld [vmem:[%s3 + $0x8] sm:$0xf]
  %v109 = vld [vmem:[%s3 + $0xc] sm:$0xf]
  %v110 = vld [vmem:[%s6] sm:$0x1]
  %v112 = vperm.slane %v110, 0
  %v118 = vunpack.c.l.b16 %v106
  %v119 = vunpack.c.l.b16 %v107
  %v120 = vunpack.c.l.b16 %v108
  %v121 = vunpack.c.l.b16 %v109
  %v122 = vpack.c.b16 %v119, %v118
  %v123 = vpack.c.b16 %v121, %v120
  %v127 = vsel %vm42, %v105, 0
  %129 = vmatpush.bf16.msra.mxu0 0
  %130 = vmatpush.bf16.msra.mxu0 0
  %131 = vmatpush.bf16.msra.mxu0 0
  %132 = vmatpush.bf16.msra.mxu0 0
  %133 = vmatpush.bf16.msra.mxu0 0
  %134 = vmatpush.bf16.msra.mxu0 0
  %135 = vmatpush.bf16.msra.mxu0 %v123
  %136 = vmatpush.bf16.msra.mxu0 %v122
  %137 = vmatmul.bf16.gmra.mxu0 %v127
  %v138 = vpop.f32.mrf.mxu0
  %v139 = vadd.f32 %v112, %v138
  %v140 = vpop.f32.mrf.mxu0
  %v141 = vadd.f32 %v112, %v140
  %142 = vdwg.mxu0
  %v143 = vpack.c.bf16 %v139, %v139
  %v144 = vpack.c.bf16 %v141, %v141
  %vm145 = vcmask 257024
  %146 = vst.msk [vmem:[%s9] sm:$0xf] %vm145, %v143
  %vm147 = vcmask 253952
  %148 = vst.msk [vmem:[%s9 + $0x4] sm:$0x1] %vm147, %v144
  %v149 = vld [vmem:[%s4] sm:$0xf]
  %v150 = vld [vmem:[%s4 + $0x4] sm:$0xf]
  %v151 = vld [vmem:[%s4 + $0x8] sm:$0xf]
  %v152 = vld [vmem:[%s4 + $0xc] sm:$0xf]
  %v153 = vld [vmem:[%s7] sm:$0x1]
  %v155 = vperm.slane %v153, 0
  %v161 = vunpack.c.l.b16 %v149
  %v162 = vunpack.c.l.b16 %v150
  %v163 = vunpack.c.l.b16 %v151
  %v164 = vunpack.c.l.b16 %v152
  %v165 = vpack.c.b16 %v162, %v161
  %v166 = vpack.c.b16 %v164, %v163
  %169 = vmatpush.bf16.msra.mxu0 0
  %170 = vmatpush.bf16.msra.mxu0 0
  %171 = vmatpush.bf16.msra.mxu0 0
  %172 = vmatpush.bf16.msra.mxu0 0
  %173 = vmatpush.bf16.msra.mxu0 0
  %174 = vmatpush.bf16.msra.mxu0 0
  %175 = vmatpush.bf16.msra.mxu0 %v166
  %176 = vmatpush.bf16.msra.mxu0 %v165
  %177 = vmatmul.bf16.gmra.mxu0 %v127
  %v178 = vpop.f32.mrf.mxu0
  %v179 = vadd.f32 %v155, %v178
  %v180 = vpop.f32.mrf.mxu0
  %v181 = vadd.f32 %v155, %v180
  %182 = vdwg.mxu0
  %v183 = vpack.c.bf16 %v179, %v179
  %v184 = vpack.c.bf16 %v181, %v181
  %185 = vst.msk [vmem:[%s10] sm:$0xf] %vm145, %v183
  %186 = vst.msk [vmem:[%s10 + $0x4] sm:$0x1] %vm147, %v184
  %v187 = vld [vmem:[%s5] sm:$0xf]
  %v188 = vld [vmem:[%s5 + $0x4] sm:$0xf]
  %v189 = vld [vmem:[%s5 + $0x8] sm:$0xf]
  %v190 = vld [vmem:[%s5 + $0xc] sm:$0xf]
  %v191 = vld [vmem:[%s8] sm:$0x1]
  %v193 = vperm.slane %v191, 0
  %v199 = vunpack.c.l.b16 %v187
  %v200 = vunpack.c.l.b16 %v188
  %v201 = vunpack.c.l.b16 %v189
  %v202 = vunpack.c.l.b16 %v190
  %v203 = vpack.c.b16 %v200, %v199
  %v204 = vpack.c.b16 %v202, %v201
  %207 = vmatpush.bf16.msra.mxu0 0
  %208 = vmatpush.bf16.msra.mxu0 0
  %209 = vmatpush.bf16.msra.mxu0 0
  %210 = vmatpush.bf16.msra.mxu0 0
  %211 = vmatpush.bf16.msra.mxu0 0
  %212 = vmatpush.bf16.msra.mxu0 0
  %213 = vmatpush.bf16.msra.mxu0 %v204
  %214 = vmatpush.bf16.msra.mxu0 %v203
  %215 = vmatmul.bf16.gmra.mxu0 %v127
  %v216 = vpop.f32.mrf.mxu0
  %v217 = vadd.f32 %v193, %v216
  %v218 = vpop.f32.mrf.mxu0
  %v219 = vadd.f32 %v193, %v218
  %220 = vdwg.mxu0
  %v221 = vpack.c.bf16 %v217, %v217
  %v222 = vpack.c.bf16 %v219, %v219
  %223 = vst.msk [vmem:[%s11] sm:$0xf] %vm145, %v221
  %224 = vst.msk [vmem:[%s11 + $0x4] sm:$0x1] %vm147, %v222
  // Predicated region
  $region38: #{_lambda_.15} parent=0 // pred_check
    _
  $region39: #{_lambda_.15} parent=0 // pred_check_branch
    %226 = sbr.rel (0) target = $region41
  $region40: #{_lambda_.15} parent=0 // pred_region
    _
  $region41: #{_lambda_.15} parent=0 // pred_fallthru
    _
  // Predicated region
  $region42: #{_lambda_.15} parent=0 // pred_check
    _
  $region43: #{_lambda_.15} parent=0 // pred_check_branch
    %228 = sbr.rel (0) target = $region45
  $region44: #{_lambda_.15} parent=0 // pred_region
    _
  $region45: #{_lambda_.15} parent=0 // pred_fallthru
    _
  // Predicated region
  $region46: #{_lambda_.15} parent=0 // pred_check
    _
  $region47: #{_lambda_.15} parent=0 // pred_check_branch
    %230 = sbr.rel (0) target = $region49
  $region48: #{_lambda_.15} parent=0 // pred_region
    _
  $region49: #{_lambda_.15} parent=0 // pred_fallthru
    _
  // Predicated region
  $region50: #{_lambda_.15} parent=0 // pred_check
    _
  $region51: #{_lambda_.15} parent=0 // pred_check_branch
    %232 = sbr.rel (0) target = $region53
  $region52: #{_lambda_.15} parent=0 // pred_region
    _
  $region53: #{_lambda_.15} parent=0 // pred_fallthru
    _
  // Predicated region
  $region54: #{_lambda_.15} parent=0 // pred_check
    _
  $region55: #{_lambda_.15} parent=0 // pred_check_branch
    %234 = sbr.rel (0) target = $region57
  $region56: #{_lambda_.15} parent=0 // pred_region
    _
  $region57: #{_lambda_.15} parent=0 // pred_fallthru
    _
  // Predicated region
  $region58: #{_lambda_.15} parent=0 // pred_check
    _
  $region59: #{_lambda_.15} parent=0 // pred_check_branch
    %236 = sbr.rel (0) target = $region61
  $region60: #{_lambda_.15} parent=0 // pred_region
    _
  $region61: #{_lambda_.15} parent=0 // pred_fallthru
    _

// kernel: _lambda_.17
$region0: #{_lambda_.17}
  #allocation0 [shape = 'u32[]', space=smem, size = 0x4, offset = 0x4, fixed_abs, tag = 'smem constant byte address 0x4 - core index']
  #allocation1 [shape = 'u32[72,128]{1,0:T(1,128)}', space=vmem, size = 0x9000, scoped, tag = 'internal scratch']
  %s0 = inlined_call_operand.vmem [shape: bf16[10,32], index: 0, kind: input, shape index: {}]
  %s1 = inlined_call_operand.vmem [shape: bf16[32,32], index: 1, kind: input, shape index: {}]
  %s2 = inlined_call_operand.vmem [shape: f32[1,32], index: 2, kind: input, shape index: {}]
  %s3 = inlined_call_operand.vmem [shape: bf16[10,32], index: 3, kind: input, shape index: {}, may-alias: {3,4}]
  %s4 = inlined_call_operand.vmem [shape: bf16[10,32], index: 4, kind: output, shape index: {}, may-alias: {3,4}]
  %s5 = sld [smem:[#allocation0]]
  $region26: #{_lambda_.17} parent=0
    _
  %s7 = ssub.s32 1, %s5
  %s8 = scalar_select 0, %s7, %s5
  // Predicated region
  $region2: #{_lambda_.17} parent=0 // pred_check
    _
  $region3: #{_lambda_.17} parent=0 // pred_check_branch
    %10 = sbr.rel (0) target = $region5
  $region4: #{_lambda_.17} parent=0 // pred_region
    _
  $region5: #{_lambda_.17} parent=0 // pred_fallthru
    _
  // Predicated region
  $region6: #{_lambda_.17} parent=0 // pred_check
    _
  $region7: #{_lambda_.17} parent=0 // pred_check_branch
    %12 = sbr.rel (0) target = $region9
  $region8: #{_lambda_.17} parent=0 // pred_region
    _
  $region9: #{_lambda_.17} parent=0 // pred_fallthru
    _
  // Predicated region
  $region10: #{_lambda_.17} parent=0 // pred_check
    _
  $region11: #{_lambda_.17} parent=0 // pred_check_branch
    %14 = sbr.rel (0) target = $region13
  $region12: #{_lambda_.17} parent=0 // pred_region
    _
  $region13: #{_lambda_.17} parent=0 // pred_fallthru
    _
  // Predicated region
  $region14: #{_lambda_.17} parent=0 // pred_check
    _
  $region15: #{_lambda_.17} parent=0 // pred_check_branch
    %16 = sbr.rel (0) target = $region17
  $region16: #{_lambda_.17} parent=0 // pred_region
    _
  $region17: #{_lambda_.17} parent=0 // pred_fallthru
    _
  %v18 = vld [vmem:[%s0] sm:$0xf]
  %v19 = vld [vmem:[%s0 + $0x4] sm:$0x1]
  %v20 = vld [vmem:[%s1] sm:$0xf]
  %v21 = vld [vmem:[%s1 + $0x4] sm:$0xf]
  %v22 = vld [vmem:[%s1 + $0x8] sm:$0xf]
  %v23 = vld [vmem:[%s1 + $0xc] sm:$0xf]
  %v24 = vld [vmem:[%s2] sm:$0x1]
  %v26 = vperm.slane %v24, 0
  %v30 = vunpack.c.l.b16 %v18
  %v31 = vunpack.c.l.b16 %v19
  %v32 = vpack.c.b16 %v31, %v30
  %v37 = vunpack.c.l.b16 %v20
  %v38 = vunpack.c.l.b16 %v21
  %v39 = vunpack.c.l.b16 %v22
  %v40 = vunpack.c.l.b16 %v23
  %v41 = vpack.c.b16 %v38, %v37
  %v42 = vpack.c.b16 %v40, %v39
  %vm45 = vcmask 261120
  %v47 = vsel %vm45, %v32, 0
  %49 = vmatpush.bf16.msra.mxu0 0
  %50 = vmatpush.bf16.msra.mxu0 0
  %51 = vmatpush.bf16.msra.mxu0 0
  %52 = vmatpush.bf16.msra.mxu0 0
  %53 = vmatpush.bf16.msra.mxu0 0
  %54 = vmatpush.bf16.msra.mxu0 0
  %55 = vmatpush.bf16.msra.mxu0 %v42
  %56 = vmatpush.bf16.msra.mxu0 %v41
  %57 = vmatmul.bf16.gmra.mxu0 %v47
  %v58 = vpop.f32.mrf.mxu0
  %v59 = vadd.f32 %v26, %v58
  %v60 = vpop.f32.mrf.mxu0
  %v61 = vadd.f32 %v26, %v60
  %62 = vdwg.mxu0
  %v63 = vld [vmem:[%s3] sm:$0xf]
  %v64 = vld [vmem:[%s3 + $0x4] sm:$0x1]
  %v65 = vunpack.c.l.bf16 %v63
  %v66 = vunpack.c.l.bf16 %v64
  %v67 = vadd.f32 %v59, %v65
  %v68 = vadd.f32 %v61, %v66
  %v69 = vpack.c.bf16 %v67, %v67
  %v70 = vpack.c.bf16 %v68, %v68
  %vm71 = vcmask 257024
  %72 = vst.msk [vmem:[%s4] sm:$0xf] %vm71, %v69
  %vm73 = vcmask 253952
  %74 = vst.msk [vmem:[%s4 + $0x4] sm:$0x1] %vm73, %v70
  // Predicated region
  $region18: #{_lambda_.17} parent=0 // pred_check
    _
  $region19: #{_lambda_.17} parent=0 // pred_check_branch
    %76 = sbr.rel (0) target = $region21
  $region20: #{_lambda_.17} parent=0 // pred_region
    _
  $region21: #{_lambda_.17} parent=0 // pred_fallthru
    _
  // Predicated region
  $region22: #{_lambda_.17} parent=0 // pred_check
    _
  $region23: #{_lambda_.17} parent=0 // pred_check_branch
    %78 = sbr.rel (0) target = $region25
  $region24: #{_lambda_.17} parent=0 // pred_region
    _
  $region25: #{_lambda_.17} parent=0 // pred_fallthru
    _

// kernel: _lambda_.19
$region0: #{_lambda_.19}
  #allocation0 [shape = 'u32[]', space=smem, size = 0x4, offset = 0x4, fixed_abs, tag = 'smem constant byte address 0x4 - core index']
  #allocation1 [shape = 'u32[72,128]{1,0:T(1,128)}', space=vmem, size = 0x9000, scoped, tag = 'internal scratch']
  %s0 = inlined_call_operand.vmem [shape: bf16[10,64], index: 0, kind: input, shape index: {}]
  %s1 = inlined_call_operand.vmem [shape: bf16[64,32], index: 1, kind: input, shape index: {}]
  %s2 = inlined_call_operand.vmem [shape: f32[1,32], index: 2, kind: input, shape index: {}]
  %s3 = inlined_call_operand.vmem [shape: bf16[10,32], index: 3, kind: input, shape index: {}, may-alias: {3,4}]
  %s4 = inlined_call_operand.vmem [shape: bf16[10,32], index: 4, kind: output, shape index: {}, may-alias: {3,4}]
  %s5 = sld [smem:[#allocation0]]
  $region26: #{_lambda_.19} parent=0
    _
  %s7 = ssub.s32 1, %s5
  %s8 = scalar_select 0, %s7, %s5
  // Predicated region
  $region2: #{_lambda_.19} parent=0 // pred_check
    _
  $region3: #{_lambda_.19} parent=0 // pred_check_branch
    %10 = sbr.rel (0) target = $region5
  $region4: #{_lambda_.19} parent=0 // pred_region
    _
  $region5: #{_lambda_.19} parent=0 // pred_fallthru
    _
  // Predicated region
  $region6: #{_lambda_.19} parent=0 // pred_check
    _
  $region7: #{_lambda_.19} parent=0 // pred_check_branch
    %12 = sbr.rel (0) target = $region9
  $region8: #{_lambda_.19} parent=0 // pred_region
    _
  $region9: #{_lambda_.19} parent=0 // pred_fallthru
    _
  // Predicated region
  $region10: #{_lambda_.19} parent=0 // pred_check
    _
  $region11: #{_lambda_.19} parent=0 // pred_check_branch
    %14 = sbr.rel (0) target = $region13
  $region12: #{_lambda_.19} parent=0 // pred_region
    _
  $region13: #{_lambda_.19} parent=0 // pred_fallthru
    _
  // Predicated region
  $region14: #{_lambda_.19} parent=0 // pred_check
    _
  $region15: #{_lambda_.19} parent=0 // pred_check_branch
    %16 = sbr.rel (0) target = $region17
  $region16: #{_lambda_.19} parent=0 // pred_region
    _
  $region17: #{_lambda_.19} parent=0 // pred_fallthru
    _
  %v18 = vld [vmem:[%s0] sm:$0xf]
  %v19 = vld [vmem:[%s0 + $0x4] sm:$0x1]
  %v20 = vld [vmem:[%s1] sm:$0xf]
  %v21 = vld [vmem:[%s1 + $0x4] sm:$0xf]
  %v22 = vld [vmem:[%s1 + $0x8] sm:$0xf]
  %v23 = vld [vmem:[%s1 + $0xc] sm:$0xf]
  %v24 = vld [vmem:[%s1 + $0x10] sm:$0xf]
  %v25 = vld [vmem:[%s1 + $0x14] sm:$0xf]
  %v26 = vld [vmem:[%s1 + $0x18] sm:$0xf]
  %v27 = vld [vmem:[%s1 + $0x1c] sm:$0xf]
  %v28 = vld [vmem:[%s2] sm:$0x1]
  %v30 = vperm.slane %v28, 0
  %v34 = vunpack.c.l.b16 %v18
  %v35 = vunpack.c.l.b16 %v19
  %v36 = vpack.c.b16 %v35, %v34
  %v45 = vunpack.c.l.b16 %v20
  %v46 = vunpack.c.l.b16 %v21
  %v47 = vunpack.c.l.b16 %v22
  %v48 = vunpack.c.l.b16 %v23
  %v49 = vunpack.c.l.b16 %v24
  %v50 = vunpack.c.l.b16 %v25
  %v51 = vunpack.c.l.b16 %v26
  %v52 = vunpack.c.l.b16 %v27
  %v53 = vpack.c.b16 %v46, %v45
  %v54 = vpack.c.b16 %v48, %v47
  %v55 = vpack.c.b16 %v50, %v49
  %v56 = vpack.c.b16 %v52, %v51
  %vm61 = vcmask 523264
  %v63 = vsel %vm61, %v36, 0
  %65 = vmatpush.bf16.msra.mxu0 0
  %66 = vmatpush.bf16.msra.mxu0 0
  %67 = vmatpush.bf16.msra.mxu0 0
  %68 = vmatpush.bf16.msra.mxu0 0
  %69 = vmatpush.bf16.msra.mxu0 %v56
  %70 = vmatpush.bf16.msra.mxu0 %v55
  %71 = vmatpush.bf16.msra.mxu0 %v54
  %72 = vmatpush.bf16.msra.mxu0 %v53
  %73 = vmatmul.bf16.gmra.mxu0 %v63
  %v74 = vpop.f32.mrf.mxu0
  %v75 = vadd.f32 %v30, %v74
  %v76 = vpop.f32.mrf.mxu0
  %v77 = vadd.f32 %v30, %v76
  %78 = vdwg.mxu0
  %v79 = vld [vmem:[%s3] sm:$0xf]
  %v80 = vld [vmem:[%s3 + $0x4] sm:$0x1]
  %v81 = vunpack.c.l.bf16 %v79
  %v82 = vunpack.c.l.bf16 %v80
  %v83 = vadd.f32 %v75, %v81
  %v84 = vadd.f32 %v77, %v82
  %v85 = vpack.c.bf16 %v83, %v83
  %v86 = vpack.c.bf16 %v84, %v84
  %vm87 = vcmask 257024
  %88 = vst.msk [vmem:[%s4] sm:$0xf] %vm87, %v85
  %vm89 = vcmask 253952
  %90 = vst.msk [vmem:[%s4 + $0x4] sm:$0x1] %vm89, %v86
  // Predicated region
  $region18: #{_lambda_.19} parent=0 // pred_check
    _
  $region19: #{_lambda_.19} parent=0 // pred_check_branch
    %92 = sbr.rel (0) target = $region21
  $region20: #{_lambda_.19} parent=0 // pred_region
    _
  $region21: #{_lambda_.19} parent=0 // pred_fallthru
    _
  // Predicated region
  $region22: #{_lambda_.19} parent=0 // pred_check
    _
  $region23: #{_lambda_.19} parent=0 // pred_check_branch
    %94 = sbr.rel (0) target = $region25
  $region24: #{_lambda_.19} parent=0 // pred_region
    _
  $region25: #{_lambda_.19} parent=0 // pred_fallthru
    _

// kernel: _lambda_.18
$region0: #{_lambda_.18}
  #allocation0 [shape = 'u32[]', space=smem, size = 0x4, offset = 0x4, fixed_abs, tag = 'smem constant byte address 0x4 - core index']
  #allocation1 [shape = 'u32[72,128]{1,0:T(1,128)}', space=vmem, size = 0x9000, scoped, tag = 'internal scratch']
  %s0 = inlined_call_operand.vmem [shape: bf16[10,32], index: 0, kind: input, shape index: {}]
  %s1 = inlined_call_operand.vmem [shape: f32[1,32], index: 1, kind: input, shape index: {}]
  %s2 = inlined_call_operand.vmem [shape: f32[1,32], index: 2, kind: input, shape index: {}]
  %s3 = inlined_call_operand.vmem [shape: bf16[32,64], index: 3, kind: input, shape index: {}]
  %s4 = inlined_call_operand.vmem [shape: f32[1,64], index: 4, kind: input, shape index: {}]
  %s5 = inlined_call_operand.vmem [shape: bf16[10,64], index: 5, kind: output, shape index: {}]
  %s6 = sld [smem:[#allocation0]]
  $region30: #{_lambda_.18} parent=0
    _
  %s8 = ssub.s32 1, %s6
  %s9 = scalar_select 0, %s8, %s6
  // Predicated region
  $region2: #{_lambda_.18} parent=0 // pred_check
    _
  $region3: #{_lambda_.18} parent=0 // pred_check_branch
    %11 = sbr.rel (0) target = $region5
  $region4: #{_lambda_.18} parent=0 // pred_region
    _
  $region5: #{_lambda_.18} parent=0 // pred_fallthru
    _
  // Predicated region
  $region6: #{_lambda_.18} parent=0 // pred_check
    _
  $region7: #{_lambda_.18} parent=0 // pred_check_branch
    %13 = sbr.rel (0) target = $region9
  $region8: #{_lambda_.18} parent=0 // pred_region
    _
  $region9: #{_lambda_.18} parent=0 // pred_fallthru
    _
  // Predicated region
  $region10: #{_lambda_.18} parent=0 // pred_check
    _
  $region11: #{_lambda_.18} parent=0 // pred_check_branch
    %15 = sbr.rel (0) target = $region13
  $region12: #{_lambda_.18} parent=0 // pred_region
    _
  $region13: #{_lambda_.18} parent=0 // pred_fallthru
    _
  // Predicated region
  $region14: #{_lambda_.18} parent=0 // pred_check
    _
  $region15: #{_lambda_.18} parent=0 // pred_check_branch
    %17 = sbr.rel (0) target = $region17
  $region16: #{_lambda_.18} parent=0 // pred_region
    _
  $region17: #{_lambda_.18} parent=0 // pred_fallthru
    _
  // Predicated region
  $region18: #{_lambda_.18} parent=0 // pred_check
    _
  $region19: #{_lambda_.18} parent=0 // pred_check_branch
    %19 = sbr.rel (0) target = $region21
  $region20: #{_lambda_.18} parent=0 // pred_region
    _
  $region21: #{_lambda_.18} parent=0 // pred_fallthru
    _
  %v21 = vld [vmem:[%s0] sm:$0xf]
  %v22 = vld [vmem:[%s0 + $0x4] sm:$0x1]
  %v23 = vld [vmem:[%s1] sm:$0x1]
  %v24 = vld [vmem:[%s2] sm:$0x1]
  %v25 = vunpack.c.l.bf16 %v21
  %v26 = vunpack.c.l.bf16 %v22
  %vm27 = vcmask 261120
  %v28 = vsel %vm27, %v25, 0.0
  %29 = vadd.xlane.f32.xlu0 %v28
  %v30 = vpop.xlane.xlu0 %29
  %vm31 = vcmask 254976
  %v32 = vsel %vm31, %v26, 0.0
  %33 = vadd.xlane.f32.xlu0 %v32
  %v34 = vpop.xlane.xlu0 %33
  %v35 = vrcp.pop 32.0
  %v36 = vmul.f32 32.0, %v35
  %v37 = vsub.f32 1.0, %v36
  %v38 = vmul.f32 %v35, %v37
  %v39 = vadd.f32 %v35, %v38
  %vm40 = vweird.f32 %v35
  %v41 = vsel %vm40, %v35, %v39
  %v42 = vmul.f32 %v30, %v41
  %v43 = vmul.f32 %v34, %v41
  %v44 = vsub.f32 %v25, %v42
  %v45 = vsub.f32 %v26, %v43
  %v46 = vmul.f32 %v44, %v44
  %v47 = vmul.f32 %v45, %v45
  %v48 = vsel %vm27, %v46, 0.0
  %49 = vadd.xlane.f32.xlu0 %v48
  %v50 = vpop.xlane.xlu0 %49
  %v51 = vsel %vm31, %v47, 0.0
  %52 = vadd.xlane.f32.xlu0 %v51
  %v53 = vpop.xlane.xlu0 %52
  %v54 = vmul.f32 %v50, %v41
  %v55 = vmul.f32 %v53, %v41
  %v56 = vadd.f32 %v54, 1e-06
  %v57 = vadd.f32 %v55, 1e-06
  %v58 = vrsqrt.pop %v56
  %v59 = vmul.f32 %v58, %v56
  %v60 = vmul.f32 %v59, %v58
  %v61 = vmul.f32 0.5, %v60
  %v62 = vsub.f32 1.5, %v61
  %v63 = vmul.f32 %v58, %v62
  %vm64 = vweird.f32 %v56
  %vm65 = vweird.f32 %v58
  %vm66 = vmor %vm64, %vm65
  %v67 = vsel %vm66, %v58, %v63
  %v68 = vrsqrt.pop %v57
  %v69 = vmul.f32 %v68, %v57
  %v70 = vmul.f32 %v69, %v68
  %v71 = vmul.f32 0.5, %v70
  %v72 = vsub.f32 1.5, %v71
  %v73 = vmul.f32 %v68, %v72
  %vm74 = vweird.f32 %v57
  %vm75 = vweird.f32 %v68
  %vm76 = vmor %vm74, %vm75
  %v77 = vsel %vm76, %v68, %v73
  %v78 = vmul.f32 %v44, %v67
  %v79 = vmul.f32 %v45, %v77
  %v81 = vperm.slane %v23, 0
  %v83 = vmul.f32 %v78, %v81
  %v84 = vmul.f32 %v79, %v81
  %v86 = vperm.slane %v24, 0
  %v88 = vadd.f32 %v83, %v86
  %v89 = vadd.f32 %v84, %v86
  %v90 = vpack.c.bf16 %v89, %v88
  %v91 = vld [vmem:[%s3] sm:$0xf]
  %v92 = vld [vmem:[%s3 + $0x4] sm:$0xf]
  %v93 = vld [vmem:[%s3 + $0x8] sm:$0xf]
  %v94 = vld [vmem:[%s3 + $0xc] sm:$0xf]
  %v95 = vld [vmem:[%s4] sm:$0x1]
  %v97 = vperm.slane %v95, 0
  %v103 = vunpack.c.l.b16 %v91
  %v104 = vunpack.c.l.b16 %v92
  %v105 = vunpack.c.l.b16 %v93
  %v106 = vunpack.c.l.b16 %v94
  %v107 = vpack.c.b16 %v104, %v103
  %v108 = vpack.c.b16 %v106, %v105
  %v112 = vsel %vm27, %v90, 0
  %114 = vmatpush.bf16.msra.mxu0 0
  %115 = vmatpush.bf16.msra.mxu0 0
  %116 = vmatpush.bf16.msra.mxu0 0
  %117 = vmatpush.bf16.msra.mxu0 0
  %118 = vmatpush.bf16.msra.mxu0 0
  %119 = vmatpush.bf16.msra.mxu0 0
  %120 = vmatpush.bf16.msra.mxu0 %v108
  %121 = vmatpush.bf16.msra.mxu0 %v107
  %122 = vmatmul.bf16.gmra.mxu0 %v112
  %v123 = vpop.f32.mrf.mxu0
  %v124 = vadd.f32 %v97, %v123
  %v125 = vpop.f32.mrf.mxu0
  %v126 = vadd.f32 %v97, %v125
  %127 = vdwg.mxu0
  %v128 = vmul.f32 %v124, %v124
  %v129 = vmul.f32 %v126, %v126
  %v130 = vmul.f32 %v124, %v128
  %v131 = vmul.f32 %v126, %v129
  %v132 = vmul.f32 %v130, 0.044715
  %v133 = vmul.f32 %v131, 0.044715
  %v134 = vadd.f32 %v124, %v132
  %v135 = vadd.f32 %v126, %v133
  %v136 = vmul.f32 %v134, 0.7978846
  %v137 = vmul.f32 %v135, 0.7978846
  %v138 = vtanh.pop %v136
  %v139 = vtanh.pop %v137
  %v140 = vadd.f32 %v138, 1.0
  %v141 = vadd.f32 %v139, 1.0
  %v142 = vmul.f32 %v140, 0.5
  %v143 = vmul.f32 %v141, 0.5
  %v144 = vmul.f32 %v124, %v142
  %v145 = vmul.f32 %v126, %v143
  %v146 = vpack.c.bf16 %v144, %v144
  %v147 = vpack.c.bf16 %v145, %v145
  %vm148 = vcmask 519168
  %149 = vst.msk [vmem:[%s5] sm:$0xf] %vm148, %v146
  %vm150 = vcmask 516096
  %151 = vst.msk [vmem:[%s5 + $0x4] sm:$0x1] %vm150, %v147
  // Predicated region
  $region22: #{_lambda_.18} parent=0 // pred_check
    _
  $region23: #{_lambda_.18} parent=0 // pred_check_branch
    %153 = sbr.rel (0) target = $region25
  $region24: #{_lambda_.18} parent=0 // pred_region
    _
  $region25: #{_lambda_.18} parent=0 // pred_fallthru
    _
  // Predicated region
  $region26: #{_lambda_.18} parent=0 // pred_check
    _
  $region27: #{_lambda_.18} parent=0 // pred_check_branch
    %155 = sbr.rel (0) target = $region29
  $region28: #{_lambda_.18} parent=0 // pred_region
    _
  $region29: #{_lambda_.18} parent=0 // pred_fallthru
    _

// kernel: _lambda_.25
$region0: #{_lambda_.25}
  #allocation0 [shape = 'u32[]', space=smem, size = 0x4, offset = 0x4, fixed_abs, tag = 'smem constant byte address 0x4 - core index']
  #allocation1 [shape = 'u32[72,128]{1,0:T(1,128)}', space=vmem, size = 0x9000, scoped, tag = 'internal scratch']
  %s0 = inlined_call_operand.vmem [shape: bf16[10,32], index: 0, kind: input, shape index: {}]
  %s1 = inlined_call_operand.vmem [shape: f32[1,32], index: 1, kind: input, shape index: {}]
  %s2 = inlined_call_operand.vmem [shape: f32[1,32], index: 2, kind: input, shape index: {}]
  %s3 = inlined_call_operand.vmem [shape: f32[10,32], index: 3, kind: output, shape index: {}]
  %s4 = sld [smem:[#allocation0]]
  $region22: #{_lambda_.25} parent=0
    _
  %s6 = ssub.s32 1, %s4
  %s7 = scalar_select 0, %s6, %s4
  // Predicated region
  $region2: #{_lambda_.25} parent=0 // pred_check
    _
  $region3: #{_lambda_.25} parent=0 // pred_check_branch
    %9 = sbr.rel (0) target = $region5
  $region4: #{_lambda_.25} parent=0 // pred_region
    _
  $region5: #{_lambda_.25} parent=0 // pred_fallthru
    _
  // Predicated region
  $region6: #{_lambda_.25} parent=0 // pred_check
    _
  $region7: #{_lambda_.25} parent=0 // pred_check_branch
    %11 = sbr.rel (0) target = $region9
  $region8: #{_lambda_.25} parent=0 // pred_region
    _
  $region9: #{_lambda_.25} parent=0 // pred_fallthru
    _
  // Predicated region
  $region10: #{_lambda_.25} parent=0 // pred_check
    _
  $region11: #{_lambda_.25} parent=0 // pred_check_branch
    %13 = sbr.rel (0) target = $region13
  $region12: #{_lambda_.25} parent=0 // pred_region
    _
  $region13: #{_lambda_.25} parent=0 // pred_fallthru
    _
  %v14 = vld [vmem:[%s0] sm:$0xf]
  %v15 = vld [vmem:[%s0 + $0x4] sm:$0x1]
  %v16 = vld [vmem:[%s1] sm:$0x1]
  %v17 = vld [vmem:[%s2] sm:$0x1]
  %v18 = vunpack.c.l.bf16 %v14
  %v19 = vunpack.c.l.bf16 %v15
  %vm20 = vcmask 261120
  %v21 = vsel %vm20, %v18, 0.0
  %22 = vadd.xlane.f32.xlu0 %v21
  %v23 = vpop.xlane.xlu0 %22
  %vm24 = vcmask 254976
  %v25 = vsel %vm24, %v19, 0.0
  %26 = vadd.xlane.f32.xlu0 %v25
  %v27 = vpop.xlane.xlu0 %26
  %v28 = vrcp.pop 32.0
  %v29 = vmul.f32 32.0, %v28
  %v30 = vsub.f32 1.0, %v29
  %v31 = vmul.f32 %v28, %v30
  %v32 = vadd.f32 %v28, %v31
  %vm33 = vweird.f32 %v28
  %v34 = vsel %vm33, %v28, %v32
  %v35 = vmul.f32 %v23, %v34
  %v36 = vmul.f32 %v27, %v34
  %v37 = vsub.f32 %v18, %v35
  %v38 = vsub.f32 %v19, %v36
  %v39 = vmul.f32 %v37, %v37
  %v40 = vmul.f32 %v38, %v38
  %v41 = vsel %vm20, %v39, 0.0
  %42 = vadd.xlane.f32.xlu0 %v41
  %v43 = vpop.xlane.xlu0 %42
  %v44 = vsel %vm24, %v40, 0.0
  %45 = vadd.xlane.f32.xlu0 %v44
  %v46 = vpop.xlane.xlu0 %45
  %v47 = vmul.f32 %v43, %v34
  %v48 = vmul.f32 %v46, %v34
  %v49 = vadd.f32 %v47, 1e-06
  %v50 = vadd.f32 %v48, 1e-06
  %v51 = vrsqrt.pop %v49
  %v52 = vmul.f32 %v51, %v49
  %v53 = vmul.f32 %v52, %v51
  %v54 = vmul.f32 0.5, %v53
  %v55 = vsub.f32 1.5, %v54
  %v56 = vmul.f32 %v51, %v55
  %vm57 = vweird.f32 %v49
  %vm58 = vweird.f32 %v51
  %vm59 = vmor %vm57, %vm58
  %v60 = vsel %vm59, %v51, %v56
  %v61 = vrsqrt.pop %v50
  %v62 = vmul.f32 %v61, %v50
  %v63 = vmul.f32 %v62, %v61
  %v64 = vmul.f32 0.5, %v63
  %v65 = vsub.f32 1.5, %v64
  %v66 = vmul.f32 %v61, %v65
  %vm67 = vweird.f32 %v50
  %vm68 = vweird.f32 %v61
  %vm69 = vmor %vm67, %vm68
  %v70 = vsel %vm69, %v61, %v66
  %v71 = vmul.f32 %v37, %v60
  %v72 = vmul.f32 %v38, %v70
  %v74 = vperm.slane %v16, 0
  %v76 = vmul.f32 %v71, %v74
  %v77 = vmul.f32 %v72, %v74
  %v79 = vperm.slane %v17, 0
  %v81 = vadd.f32 %v76, %v79
  %v82 = vadd.f32 %v77, %v79
  %83 = vst.msk [vmem:[%s3] sm:$0xff] %vm20, %v81
  %84 = vst.msk [vmem:[%s3 + $0x8] sm:$0x3] %vm24, %v82
  // Predicated region
  $region14: #{_lambda_.25} parent=0 // pred_check
    _
  $region15: #{_lambda_.25} parent=0 // pred_check_branch
    %86 = sbr.rel (0) target = $region17
  $region16: #{_lambda_.25} parent=0 // pred_region
    _
  $region17: #{_lambda_.25} parent=0 // pred_fallthru
    _
  // Predicated region
  $region18: #{_lambda_.25} parent=0 // pred_check
    _
  $region19: #{_lambda_.25} parent=0 // pred_check_branch
    %88 = sbr.rel (0) target = $region21
  $region20: #{_lambda_.25} parent=0 // pred_region
    _
  $region21: #{_lambda_.25} parent=0 // pred_fallthru
    _

</llo_original>
